<compile_context>
chip_gen: v7x
topology: tpu7x:2x2x1
jax: 0.10.0
libtpu: 0.0.40
codegen_flags: <defaults>
</compile_context>

<pallas_src>
import functools

import jax
import jax.numpy as jnp
from jax import lax
from jax.experimental import pallas as pl
from jax.experimental.pallas import tpu as pltpu

_NEG_BIG = -1e30  # finite "-inf" for padded class logits (avoids 0*inf NaN)


def _round_up(x, m):
    return ((x + m - 1) // m) * m


def _learner_kernel(num_updates,
                    alpha_ref,
                    sx_ref, sy_ref, qx_ref, qy_ref,
                    tw_ref, tb_ref,
                    gw_ref, aux_ref):
    """One MAML task: theta->phi clone, `num_updates` inner SGD steps on the
    support set, then query loss / grad wrt phi / accuracy."""
    ns = sx_ref.shape[0]
    nq = qx_ref.shape[0]
    c_pad = tw_ref.shape[0]

    dn_logits = (((1,), (1,)), ((), ()))   # (N, D) x (C, D) -> (N, C)
    dn_gradw = (((0,), (0,)), ((), ()))    # (N, C) x (N, D) -> (C, D)

    alpha = alpha_ref[0]
    inv_ns = 1.0 / ns
    inv_nq = 1.0 / nq

    sx = sx_ref[...]
    sy = sy_ref[...]

    def sgd_step(_, phi):
        w, b = phi
        logits = lax.dot_general(sx, w, dn_logits,
                                 preferred_element_type=jnp.float32) + b
        m = jnp.max(logits, axis=1, keepdims=True)
        e = jnp.exp(logits - m)
        # divide on the EUP slot instead of the VALU
        p = e * pl.reciprocal(jnp.sum(e, axis=1, keepdims=True), approx=True)
        g = (p - sy) * inv_ns                      # dCE/dlogits (mean reduction)
        gw = lax.dot_general(g, sx, dn_gradw,
                             preferred_element_type=jnp.float32)
        gb = jnp.sum(g, axis=0, keepdims=True)
        return (w - alpha * gw, b - alpha * gb)    # SGD(phi, lr=alpha)

    # theta -> phi clone (carry init) + fully unrolled inner SGD loop.
    phi_w, phi_b = lax.fori_loop(0, num_updates, sgd_step,
                                 (tw_ref[...], tb_ref[...]), unroll=True)

    # ---- query-set evaluation: loss, grad wrt phi, accuracy -------------
    qx = qx_ref[...]
    qy = qy_ref[...]
    logits = lax.dot_general(qx, phi_w, dn_logits,
                             preferred_element_type=jnp.float32) + phi_b
    m = jnp.max(logits, axis=1, keepdims=True)
    e = jnp.exp(logits - m)                        # reused for LSE and probs
    s = jnp.sum(e, axis=1, keepdims=True)
    p = e * pl.reciprocal(s, approx=True)
    logp = logits - (m + jnp.log(s))

    loss = jnp.sum(-qy * logp, axis=(0, 1), keepdims=True) * inv_nq   # (1,1)

    g = (p - qy) * inv_nq
    gw_ref[...] = lax.dot_general(g, qx, dn_gradw,
                                  preferred_element_type=jnp.float32)
    gb = jnp.sum(g, axis=0, keepdims=True)                            # (1,C)

    # accuracy: first-max argmax over classes vs one-hot labels
    cls_idx = lax.broadcasted_iota(jnp.int32, logits.shape, 1)
    pred_idx = jnp.min(jnp.where(logits == m, cls_idx, c_pad),
                       axis=1, keepdims=True)                         # (Nq,1)
    hit = jnp.sum(qy * (cls_idx == pred_idx).astype(jnp.float32),
                  axis=1, keepdims=True)
    acc = jnp.sum(hit, axis=(0, 1), keepdims=True) * inv_nq           # (1,1)

    # Pack gb / loss / acc into one lane-dense (8, C_pad) tile:
    #   row 0 = grad bias, row 1 lane 0 = loss, row 1 lane 1 = accuracy.
    row = lax.broadcasted_iota(jnp.int32, (8, c_pad), 0)
    lane = lax.broadcasted_iota(jnp.int32, (8, c_pad), 1)
    scal_row = jnp.where(lane == 0, loss, jnp.where(lane == 1, acc, 0.0))
    aux_ref[...] = jnp.where(row == 0, gb, jnp.where(row == 1, scal_row, 0.0))


def learner_forward_tasks(theta_w, theta_b, support_x, support_y,
                          query_x, query_y, *, alpha=0.1, num_updates=5):
    """Meta-batched Learner.forward.

    Inputs carry a leading task axis T (theta is shared across tasks, as in
    MAML).  Returns (loss[T], (grad_W[T,C,D], grad_b[T,C]), acc[T]).
    """
    t, ns, d = support_x.shape
    nq = query_x.shape[1]
    c = theta_w.shape[0]

    c_pad = _round_up(c, 128)
    d_pad = _round_up(d, 128)
    f32 = jnp.float32

    # Zero-pad features to a lane-dense multiple of 128 (zero columns do not
    # change logits or gradients of the real rows/columns).
    sx = jnp.zeros((t, ns, d_pad), f32).at[:, :, :d].set(support_x.astype(f32))
    qx = jnp.zeros((t, nq, d_pad), f32).at[:, :, :d].set(query_x.astype(f32))
    sy_oh = jax.nn.one_hot(support_y, c_pad, dtype=f32)
    qy_oh = jax.nn.one_hot(query_y, c_pad, dtype=f32)
    # theta: pad classes with zero weights and a huge negative bias so padded
    # classes never win the softmax/argmax and receive ~zero gradient.
    tw = jnp.zeros((c_pad, d_pad), f32).at[:c, :d].set(theta_w.astype(f32))
    tb = jnp.full((1, c_pad), _NEG_BIG, f32).at[0, :c].set(theta_b.astype(f32))
    alpha_arr = jnp.asarray([alpha], f32)

    kernel = functools.partial(_learner_kernel, int(num_updates))

    gw_full, aux = pl.pallas_call(
        kernel,
        grid=(t,),
        in_specs=[
            pl.BlockSpec(memory_space=pltpu.MemorySpace.SMEM),       # alpha
            pl.BlockSpec((None, ns, d_pad), lambda i: (i, 0, 0)),    # support_x
            pl.BlockSpec((None, ns, c_pad), lambda i: (i, 0, 0)),    # support one-hot
            pl.BlockSpec((None, nq, d_pad), lambda i: (i, 0, 0)),    # query_x
            pl.BlockSpec((None, nq, c_pad), lambda i: (i, 0, 0)),    # query one-hot
            pl.BlockSpec((c_pad, d_pad), lambda i: (0, 0)),          # theta.weight (shared)
            pl.BlockSpec((1, c_pad), lambda i: (0, 0)),              # theta.bias   (shared)
        ],
        out_specs=(
            pl.BlockSpec((None, c_pad, d_pad), lambda i: (i, 0, 0)),  # dL/dW
            pl.BlockSpec((None, 8, c_pad), lambda i: (i, 0, 0)),      # gb / loss / acc
        ),
        out_shape=(
            jax.ShapeDtypeStruct((t, c_pad, d_pad), f32),
            jax.ShapeDtypeStruct((t, 8, c_pad), f32),
        ),
        compiler_params=pltpu.CompilerParams(
            dimension_semantics=("parallel",)),
    )(alpha_arr, sx, sy_oh, qx, qy_oh, tw, tb)

    grad_w = gw_full[:, :c, :d]
    grad_b = aux[:, 0, :c]
    loss = aux[:, 1, 0]
    acc = aux[:, 1, 1]
    return loss, (grad_w, grad_b), acc


def learner_forward(theta_w, theta_b, support_x, support_y, query_x, query_y,
                    *, alpha=0.1, num_updates=5):
    """Single-task Learner.forward: returns (loss, (grad_W, grad_b), acc)."""
    loss, (gw, gb), acc = learner_forward_tasks(
        theta_w, theta_b, support_x[None], support_y[None],
        query_x[None], query_y[None], alpha=alpha, num_updates=num_updates)
    return loss[0], (gw[0], gb[0]), acc[0]


if __name__ == "__main__":
    key = jax.random.PRNGKey(0)
    d, c, ns, nq, n_tasks = 32, 4, 8, 8, 4
    k1, k2, k3, k4, k5, k6 = jax.random.split(key, 6)

    # deterministic nn.Linear-style init for net_theta (shared across tasks)
    bound = 1.0 / (d ** 0.5)
    theta_w = jax.random.uniform(k1, (c, d), jnp.float32, -bound, bound)
    theta_b = jax.random.uniform(k2, (c,), jnp.float32, -bound, bound)

    support_x = jax.random.normal(k3, (n_tasks, ns, d), jnp.float32)
    support_y = jax.random.randint(k4, (n_tasks, ns), 0, c, jnp.int32)
    query_x = jax.random.normal(k5, (n_tasks, nq, d), jnp.float32)
    query_y = jax.random.randint(k6, (n_tasks, nq), 0, c, jnp.int32)

    # task-batched path (grid over tasks — both TensorCores on v7x)
    loss_t, (gw_t, gb_t), acc_t = learner_forward_tasks(
        theta_w, theta_b, support_x, support_y, query_x, query_y,
        alpha=0.1, num_updates=5)

    # single-task path (original Learner.forward signature)
    loss0, (gw0, gb0), acc0 = learner_forward(
        theta_w, theta_b, support_x[0], support_y[0], query_x[0], query_y[0],
        alpha=0.1, num_updates=5)

    jax.block_until_ready((loss_t, gw_t, gb_t, acc_t, loss0, gw0, gb0, acc0))
    print("KERNEL_OK")
</pallas_src>

<mosaic_0001>
module attributes {stable_mosaic.version = 11 : i64} {
  func.func @_learner_kernel(%arg0: i32, %arg1: memref<1xf32, #tpu.memory_space<smem>>, %arg2: memref<1x8x128xf32, #tpu.memory_space<vmem>>, %arg3: memref<1x8x128xf32, #tpu.memory_space<vmem>>, %arg4: memref<1x8x128xf32, #tpu.memory_space<vmem>>, %arg5: memref<1x8x128xf32, #tpu.memory_space<vmem>>, %arg6: memref<128x128xf32, #tpu.memory_space<vmem>>, %arg7: memref<1x128xf32, #tpu.memory_space<vmem>>, %arg8: memref<1x128x128xf32, #tpu.memory_space<vmem>>, %arg9: memref<1x8x128xf32, #tpu.memory_space<vmem>>) attributes {dimension_semantics = [#tpu.dimension_semantics<parallel>], iteration_bounds = array<i64: 4>, scalar_prefetch = 0 : i64, scratch_operands = 0 : i64, tpu.core_type = #tpu.core_type<tc>, window_params = [{transform_indices = @transform_0, window_bounds = array<i64: 1>}, {transform_indices = @transform_1, window_bounds = array<i64: 1, 8, 128>}, {transform_indices = @transform_2, window_bounds = array<i64: 1, 8, 128>}, {transform_indices = @transform_3, window_bounds = array<i64: 1, 8, 128>}, {transform_indices = @transform_4, window_bounds = array<i64: 1, 8, 128>}, {pipeline_mode = #tpu.pipeline_mode<synchronous>, transform_indices = @transform_5, window_bounds = array<i64: 128, 128>}, {pipeline_mode = #tpu.pipeline_mode<synchronous>, transform_indices = @transform_6, window_bounds = array<i64: 1, 128>}, {transform_indices = @transform_7, window_bounds = array<i64: 1, 128, 128>}, {transform_indices = @transform_8, window_bounds = array<i64: 1, 8, 128>}]} {
    %c0 = arith.constant 0 : index
    %0 = memref.load %arg1[%c0] : memref<1xf32, #tpu.memory_space<smem>>
    %c0_0 = arith.constant 0 : index
    %c0_1 = arith.constant 0 : index
    %c0_2 = arith.constant 0 : index
    %1 = vector.load %arg2[%c0_0, %c0_1, %c0_2] : memref<1x8x128xf32, #tpu.memory_space<vmem>>, vector<1x8x128xf32>
    %2 = vector.shape_cast %1 : vector<1x8x128xf32> to vector<8x128xf32>
    %c0_3 = arith.constant 0 : index
    %c0_4 = arith.constant 0 : index
    %c0_5 = arith.constant 0 : index
    %3 = vector.load %arg3[%c0_3, %c0_4, %c0_5] : memref<1x8x128xf32, #tpu.memory_space<vmem>>, vector<1x8x128xf32>
    %4 = vector.shape_cast %3 : vector<1x8x128xf32> to vector<8x128xf32>
    %c0_6 = arith.constant 0 : index
    %c0_7 = arith.constant 0 : index
    %5 = vector.load %arg6[%c0_6, %c0_7] : memref<128x128xf32, #tpu.memory_space<vmem>>, vector<128x128xf32>
    %c0_8 = arith.constant 0 : index
    %c0_9 = arith.constant 0 : index
    %6 = vector.load %arg7[%c0_8, %c0_9] : memref<1x128xf32, #tpu.memory_space<vmem>>, vector<1x128xf32>
    %c0_i32 = arith.constant 0 : i32
    %cst = arith.constant dense<0.000000e+00> : vector<8x128xf32>
    %7 = tpu.matmul %2, %5, %cst {dimension_numbers = #tpu.dot_dimension_numbers<[1], [1], [0], [0], [0, 0, 1, 0], [], []>} : vector<8x128xf32>, vector<128x128xf32>, vector<8x128xf32> -> vector<8x128xf32>
    %8 = vector.broadcast %6 : vector<1x128xf32> to vector<8x128xf32>
    %9 = arith.addf %7, %8 : vector<8x128xf32>
    %cst_10 = arith.constant dense<0xFF800000> : vector<8xf32>
    %10 = vector.multi_reduction <maximumf>, %9, %cst_10 [1] : vector<8x128xf32> to vector<8xf32>
    %11 = vector.shape_cast %10 : vector<8xf32> to vector<8x1xf32>
    %12 = vector.broadcast %11 : vector<8x1xf32> to vector<8x128xf32>
    %13 = arith.subf %9, %12 : vector<8x128xf32>
    %14 = math.exp %13 : vector<8x128xf32>
    %cst_11 = arith.constant dense<0.000000e+00> : vector<8xf32>
    %15 = vector.multi_reduction <add>, %14, %cst_11 [1] : vector<8x128xf32> to vector<8xf32>
    %16 = vector.shape_cast %15 : vector<8xf32> to vector<8x1xf32>
    %17 = tpu.reciprocal %16 {approx = true} : vector<8x1xf32> -> vector<8x1xf32>
    %18 = vector.broadcast %17 : vector<8x1xf32> to vector<8x128xf32>
    %19 = arith.mulf %14, %18 : vector<8x128xf32>
    %20 = arith.subf %19, %4 : vector<8x128xf32>
    %cst_12 = arith.constant 1.250000e-01 : f32
    %21 = vector.broadcast %cst_12 : f32 to vector<8x128xf32>
    %22 = arith.mulf %20, %21 : vector<8x128xf32>
    %cst_13 = arith.constant dense<0.000000e+00> : vector<128x128xf32>
    %23 = tpu.matmul %22, %2, %cst_13 {dimension_numbers = #tpu.dot_dimension_numbers<[0], [0], [1], [1], [0, 1, 1, 1], [], []>} : vector<8x128xf32>, vector<8x128xf32>, vector<128x128xf32> -> vector<128x128xf32>
    %cst_14 = arith.constant dense<0.000000e+00> : vector<128xf32>
    %24 = vector.multi_reduction <add>, %22, %cst_14 [0] : vector<8x128xf32> to vector<128xf32>
    %25 = vector.shape_cast %24 : vector<128xf32> to vector<1x128xf32>
    %26 = vector.broadcast %0 : f32 to vector<128x128xf32>
    %27 = arith.mulf %26, %23 : vector<128x128xf32>
    %28 = arith.subf %5, %27 : vector<128x128xf32>
    %29 = vector.broadcast %0 : f32 to vector<1x128xf32>
    %30 = arith.mulf %29, %25 : vector<1x128xf32>
    %31 = arith.subf %6, %30 : vector<1x128xf32>
    %c1_i32 = arith.constant 1 : i32
    %cst_15 = arith.constant dense<0.000000e+00> : vector<8x128xf32>
    %32 = tpu.matmul %2, %28, %cst_15 {dimension_numbers = #tpu.dot_dimension_numbers<[1], [1], [0], [0], [0, 0, 1, 0], [], []>} : vector<8x128xf32>, vector<128x128xf32>, vector<8x128xf32> -> vector<8x128xf32>
    %33 = vector.broadcast %31 : vector<1x128xf32> to vector<8x128xf32>
    %34 = arith.addf %32, %33 : vector<8x128xf32>
    %cst_16 = arith.constant dense<0xFF800000> : vector<8xf32>
    %35 = vector.multi_reduction <maximumf>, %34, %cst_16 [1] : vector<8x128xf32> to vector<8xf32>
    %36 = vector.shape_cast %35 : vector<8xf32> to vector<8x1xf32>
    %37 = vector.broadcast %36 : vector<8x1xf32> to vector<8x128xf32>
    %38 = arith.subf %34, %37 : vector<8x128xf32>
    %39 = math.exp %38 : vector<8x128xf32>
    %cst_17 = arith.constant dense<0.000000e+00> : vector<8xf32>
    %40 = vector.multi_reduction <add>, %39, %cst_17 [1] : vector<8x128xf32> to vector<8xf32>
    %41 = vector.shape_cast %40 : vector<8xf32> to vector<8x1xf32>
    %42 = tpu.reciprocal %41 {approx = true} : vector<8x1xf32> -> vector<8x1xf32>
    %43 = vector.broadcast %42 : vector<8x1xf32> to vector<8x128xf32>
    %44 = arith.mulf %39, %43 : vector<8x128xf32>
    %45 = arith.subf %44, %4 : vector<8x128xf32>
    %cst_18 = arith.constant 1.250000e-01 : f32
    %46 = vector.broadcast %cst_18 : f32 to vector<8x128xf32>
    %47 = arith.mulf %45, %46 : vector<8x128xf32>
    %cst_19 = arith.constant dense<0.000000e+00> : vector<128x128xf32>
    %48 = tpu.matmul %47, %2, %cst_19 {dimension_numbers = #tpu.dot_dimension_numbers<[0], [0], [1], [1], [0, 1, 1, 1], [], []>} : vector<8x128xf32>, vector<8x128xf32>, vector<128x128xf32> -> vector<128x128xf32>
    %cst_20 = arith.constant dense<0.000000e+00> : vector<128xf32>
    %49 = vector.multi_reduction <add>, %47, %cst_20 [0] : vector<8x128xf32> to vector<128xf32>
    %50 = vector.shape_cast %49 : vector<128xf32> to vector<1x128xf32>
    %51 = vector.broadcast %0 : f32 to vector<128x128xf32>
    %52 = arith.mulf %51, %48 : vector<128x128xf32>
    %53 = arith.subf %28, %52 : vector<128x128xf32>
    %54 = vector.broadcast %0 : f32 to vector<1x128xf32>
    %55 = arith.mulf %54, %50 : vector<1x128xf32>
    %56 = arith.subf %31, %55 : vector<1x128xf32>
    %c2_i32 = arith.constant 2 : i32
    %cst_21 = arith.constant dense<0.000000e+00> : vector<8x128xf32>
    %57 = tpu.matmul %2, %53, %cst_21 {dimension_numbers = #tpu.dot_dimension_numbers<[1], [1], [0], [0], [0, 0, 1, 0], [], []>} : vector<8x128xf32>, vector<128x128xf32>, vector<8x128xf32> -> vector<8x128xf32>
    %58 = vector.broadcast %56 : vector<1x128xf32> to vector<8x128xf32>
    %59 = arith.addf %57, %58 : vector<8x128xf32>
    %cst_22 = arith.constant dense<0xFF800000> : vector<8xf32>
    %60 = vector.multi_reduction <maximumf>, %59, %cst_22 [1] : vector<8x128xf32> to vector<8xf32>
    %61 = vector.shape_cast %60 : vector<8xf32> to vector<8x1xf32>
    %62 = vector.broadcast %61 : vector<8x1xf32> to vector<8x128xf32>
    %63 = arith.subf %59, %62 : vector<8x128xf32>
    %64 = math.exp %63 : vector<8x128xf32>
    %cst_23 = arith.constant dense<0.000000e+00> : vector<8xf32>
    %65 = vector.multi_reduction <add>, %64, %cst_23 [1] : vector<8x128xf32> to vector<8xf32>
    %66 = vector.shape_cast %65 : vector<8xf32> to vector<8x1xf32>
    %67 = tpu.reciprocal %66 {approx = true} : vector<8x1xf32> -> vector<8x1xf32>
    %68 = vector.broadcast %67 : vector<8x1xf32> to vector<8x128xf32>
    %69 = arith.mulf %64, %68 : vector<8x128xf32>
    %70 = arith.subf %69, %4 : vector<8x128xf32>
    %cst_24 = arith.constant 1.250000e-01 : f32
    %71 = vector.broadcast %cst_24 : f32 to vector<8x128xf32>
    %72 = arith.mulf %70, %71 : vector<8x128xf32>
    %cst_25 = arith.constant dense<0.000000e+00> : vector<128x128xf32>
    %73 = tpu.matmul %72, %2, %cst_25 {dimension_numbers = #tpu.dot_dimension_numbers<[0], [0], [1], [1], [0, 1, 1, 1], [], []>} : vector<8x128xf32>, vector<8x128xf32>, vector<128x128xf32> -> vector<128x128xf32>
    %cst_26 = arith.constant dense<0.000000e+00> : vector<128xf32>
    %74 = vector.multi_reduction <add>, %72, %cst_26 [0] : vector<8x128xf32> to vector<128xf32>
    %75 = vector.shape_cast %74 : vector<128xf32> to vector<1x128xf32>
    %76 = vector.broadcast %0 : f32 to vector<128x128xf32>
    %77 = arith.mulf %76, %73 : vector<128x128xf32>
    %78 = arith.subf %53, %77 : vector<128x128xf32>
    %79 = vector.broadcast %0 : f32 to vector<1x128xf32>
    %80 = arith.mulf %79, %75 : vector<1x128xf32>
    %81 = arith.subf %56, %80 : vector<1x128xf32>
    %c3_i32 = arith.constant 3 : i32
    %cst_27 = arith.constant dense<0.000000e+00> : vector<8x128xf32>
    %82 = tpu.matmul %2, %78, %cst_27 {dimension_numbers = #tpu.dot_dimension_numbers<[1], [1], [0], [0], [0, 0, 1, 0], [], []>} : vector<8x128xf32>, vector<128x128xf32>, vector<8x128xf32> -> vector<8x128xf32>
    %83 = vector.broadcast %81 : vector<1x128xf32> to vector<8x128xf32>
    %84 = arith.addf %82, %83 : vector<8x128xf32>
    %cst_28 = arith.constant dense<0xFF800000> : vector<8xf32>
    %85 = vector.multi_reduction <maximumf>, %84, %cst_28 [1] : vector<8x128xf32> to vector<8xf32>
    %86 = vector.shape_cast %85 : vector<8xf32> to vector<8x1xf32>
    %87 = vector.broadcast %86 : vector<8x1xf32> to vector<8x128xf32>
    %88 = arith.subf %84, %87 : vector<8x128xf32>
    %89 = math.exp %88 : vector<8x128xf32>
    %cst_29 = arith.constant dense<0.000000e+00> : vector<8xf32>
    %90 = vector.multi_reduction <add>, %89, %cst_29 [1] : vector<8x128xf32> to vector<8xf32>
    %91 = vector.shape_cast %90 : vector<8xf32> to vector<8x1xf32>
    %92 = tpu.reciprocal %91 {approx = true} : vector<8x1xf32> -> vector<8x1xf32>
    %93 = vector.broadcast %92 : vector<8x1xf32> to vector<8x128xf32>
    %94 = arith.mulf %89, %93 : vector<8x128xf32>
    %95 = arith.subf %94, %4 : vector<8x128xf32>
    %cst_30 = arith.constant 1.250000e-01 : f32
    %96 = vector.broadcast %cst_30 : f32 to vector<8x128xf32>
    %97 = arith.mulf %95, %96 : vector<8x128xf32>
    %cst_31 = arith.constant dense<0.000000e+00> : vector<128x128xf32>
    %98 = tpu.matmul %97, %2, %cst_31 {dimension_numbers = #tpu.dot_dimension_numbers<[0], [0], [1], [1], [0, 1, 1, 1], [], []>} : vector<8x128xf32>, vector<8x128xf32>, vector<128x128xf32> -> vector<128x128xf32>
    %cst_32 = arith.constant dense<0.000000e+00> : vector<128xf32>
    %99 = vector.multi_reduction <add>, %97, %cst_32 [0] : vector<8x128xf32> to vector<128xf32>
    %100 = vector.shape_cast %99 : vector<128xf32> to vector<1x128xf32>
    %101 = vector.broadcast %0 : f32 to vector<128x128xf32>
    %102 = arith.mulf %101, %98 : vector<128x128xf32>
    %103 = arith.subf %78, %102 : vector<128x128xf32>
    %104 = vector.broadcast %0 : f32 to vector<1x128xf32>
    %105 = arith.mulf %104, %100 : vector<1x128xf32>
    %106 = arith.subf %81, %105 : vector<1x128xf32>
    %c4_i32 = arith.constant 4 : i32
    %cst_33 = arith.constant dense<0.000000e+00> : vector<8x128xf32>
    %107 = tpu.matmul %2, %103, %cst_33 {dimension_numbers = #tpu.dot_dimension_numbers<[1], [1], [0], [0], [0, 0, 1, 0], [], []>} : vector<8x128xf32>, vector<128x128xf32>, vector<8x128xf32> -> vector<8x128xf32>
    %108 = vector.broadcast %106 : vector<1x128xf32> to vector<8x128xf32>
    %109 = arith.addf %107, %108 : vector<8x128xf32>
    %cst_34 = arith.constant dense<0xFF800000> : vector<8xf32>
    %110 = vector.multi_reduction <maximumf>, %109, %cst_34 [1] : vector<8x128xf32> to vector<8xf32>
    %111 = vector.shape_cast %110 : vector<8xf32> to vector<8x1xf32>
    %112 = vector.broadcast %111 : vector<8x1xf32> to vector<8x128xf32>
    %113 = arith.subf %109, %112 : vector<8x128xf32>
    %114 = math.exp %113 : vector<8x128xf32>
    %cst_35 = arith.constant dense<0.000000e+00> : vector<8xf32>
    %115 = vector.multi_reduction <add>, %114, %cst_35 [1] : vector<8x128xf32> to vector<8xf32>
    %116 = vector.shape_cast %115 : vector<8xf32> to vector<8x1xf32>
    %117 = tpu.reciprocal %116 {approx = true} : vector<8x1xf32> -> vector<8x1xf32>
    %118 = vector.broadcast %117 : vector<8x1xf32> to vector<8x128xf32>
    %119 = arith.mulf %114, %118 : vector<8x128xf32>
    %120 = arith.subf %119, %4 : vector<8x128xf32>
    %cst_36 = arith.constant 1.250000e-01 : f32
    %121 = vector.broadcast %cst_36 : f32 to vector<8x128xf32>
    %122 = arith.mulf %120, %121 : vector<8x128xf32>
    %cst_37 = arith.constant dense<0.000000e+00> : vector<128x128xf32>
    %123 = tpu.matmul %122, %2, %cst_37 {dimension_numbers = #tpu.dot_dimension_numbers<[0], [0], [1], [1], [0, 1, 1, 1], [], []>} : vector<8x128xf32>, vector<8x128xf32>, vector<128x128xf32> -> vector<128x128xf32>
    %cst_38 = arith.constant dense<0.000000e+00> : vector<128xf32>
    %124 = vector.multi_reduction <add>, %122, %cst_38 [0] : vector<8x128xf32> to vector<128xf32>
    %125 = vector.shape_cast %124 : vector<128xf32> to vector<1x128xf32>
    %126 = vector.broadcast %0 : f32 to vector<128x128xf32>
    %127 = arith.mulf %126, %123 : vector<128x128xf32>
    %128 = arith.subf %103, %127 : vector<128x128xf32>
    %129 = vector.broadcast %0 : f32 to vector<1x128xf32>
    %130 = arith.mulf %129, %125 : vector<1x128xf32>
    %131 = arith.subf %106, %130 : vector<1x128xf32>
    %c0_39 = arith.constant 0 : index
    %c0_40 = arith.constant 0 : index
    %c0_41 = arith.constant 0 : index
    %132 = vector.load %arg4[%c0_39, %c0_40, %c0_41] : memref<1x8x128xf32, #tpu.memory_space<vmem>>, vector<1x8x128xf32>
    %133 = vector.shape_cast %132 : vector<1x8x128xf32> to vector<8x128xf32>
    %c0_42 = arith.constant 0 : index
    %c0_43 = arith.constant 0 : index
    %c0_44 = arith.constant 0 : index
    %134 = vector.load %arg5[%c0_42, %c0_43, %c0_44] : memref<1x8x128xf32, #tpu.memory_space<vmem>>, vector<1x8x128xf32>
    %135 = vector.shape_cast %134 : vector<1x8x128xf32> to vector<8x128xf32>
    %cst_45 = arith.constant dense<0.000000e+00> : vector<8x128xf32>
    %136 = tpu.matmul %133, %128, %cst_45 {dimension_numbers = #tpu.dot_dimension_numbers<[1], [1], [0], [0], [0, 0, 1, 0], [], []>} : vector<8x128xf32>, vector<128x128xf32>, vector<8x128xf32> -> vector<8x128xf32>
    %137 = vector.broadcast %131 : vector<1x128xf32> to vector<8x128xf32>
    %138 = arith.addf %136, %137 : vector<8x128xf32>
    %cst_46 = arith.constant dense<0xFF800000> : vector<8xf32>
    %139 = vector.multi_reduction <maximumf>, %138, %cst_46 [1] : vector<8x128xf32> to vector<8xf32>
    %140 = vector.shape_cast %139 : vector<8xf32> to vector<8x1xf32>
    %141 = vector.broadcast %140 : vector<8x1xf32> to vector<8x128xf32>
    %142 = arith.subf %138, %141 : vector<8x128xf32>
    %143 = math.exp %142 : vector<8x128xf32>
    %cst_47 = arith.constant dense<0.000000e+00> : vector<8xf32>
    %144 = vector.multi_reduction <add>, %143, %cst_47 [1] : vector<8x128xf32> to vector<8xf32>
    %145 = vector.shape_cast %144 : vector<8xf32> to vector<8x1xf32>
    %146 = tpu.reciprocal %145 {approx = true} : vector<8x1xf32> -> vector<8x1xf32>
    %147 = vector.broadcast %146 : vector<8x1xf32> to vector<8x128xf32>
    %148 = arith.mulf %143, %147 : vector<8x128xf32>
    %149 = math.log %145 : vector<8x1xf32>
    %150 = arith.addf %140, %149 : vector<8x1xf32>
    %151 = vector.broadcast %150 : vector<8x1xf32> to vector<8x128xf32>
    %152 = arith.subf %138, %151 : vector<8x128xf32>
    %cst_48 = arith.constant 0.000000e+00 : f32
    %153 = vector.broadcast %cst_48 : f32 to vector<8x128xf32>
    %154 = arith.subf %153, %135 : vector<8x128xf32>
    %155 = arith.mulf %154, %152 : vector<8x128xf32>
    %156 = vector.shape_cast %155 : vector<8x128xf32> to vector<1x8x128xf32>
    %cst_49 = arith.constant dense<0.000000e+00> : vector<1xf32>
    %157 = vector.multi_reduction <add>, %156, %cst_49 [1, 2] : vector<1x8x128xf32> to vector<1xf32>
    %158 = vector.shape_cast %157 : vector<1xf32> to vector<1x1x1xf32>
    %159 = vector.extract %158[0, 0, 0] : f32 from vector<1x1x1xf32>
    %160 = vector.broadcast %159 : f32 to vector<1x1xf32>
    %cst_50 = arith.constant 1.250000e-01 : f32
    %161 = vector.broadcast %cst_50 : f32 to vector<1x1xf32>
    %162 = arith.mulf %160, %161 : vector<1x1xf32>
    %163 = arith.subf %148, %135 : vector<8x128xf32>
    %cst_51 = arith.constant 1.250000e-01 : f32
    %164 = vector.broadcast %cst_51 : f32 to vector<8x128xf32>
    %165 = arith.mulf %163, %164 : vector<8x128xf32>
    %cst_52 = arith.constant dense<0.000000e+00> : vector<128x128xf32>
    %166 = tpu.matmul %165, %133, %cst_52 {dimension_numbers = #tpu.dot_dimension_numbers<[0], [0], [1], [1], [0, 1, 1, 1], [], []>} : vector<8x128xf32>, vector<8x128xf32>, vector<128x128xf32> -> vector<128x128xf32>
    %c0_53 = arith.constant 0 : index
    %c0_54 = arith.constant 0 : index
    %c0_55 = arith.constant 0 : index
    %167 = vector.load %arg8[%c0_53, %c0_54, %c0_55] : memref<1x128x128xf32, #tpu.memory_space<vmem>>, vector<1x128x128xf32>
    %168 = vector.shape_cast %167 : vector<1x128x128xf32> to vector<128x128xf32>
    %169 = vector.shape_cast %166 : vector<128x128xf32> to vector<1x128x128xf32>
    tpu.vector_store %arg8[%c0_53, %c0_54, %c0_55], %169 {strides = array<i32>} : memref<1x128x128xf32, #tpu.memory_space<vmem>>, vector<1x128x128xf32>,
    %cst_56 = arith.constant dense<0.000000e+00> : vector<128xf32>
    %170 = vector.multi_reduction <add>, %165, %cst_56 [0] : vector<8x128xf32> to vector<128xf32>
    %171 = vector.shape_cast %170 : vector<128xf32> to vector<1x128xf32>
    %172 = tpu.iota {dimensions = array<i32: 1>} : vector<8x128xi32>
    %173 = vector.broadcast %140 : vector<8x1xf32> to vector<8x128xf32>
    %174 = arith.cmpf oeq, %138, %173 : vector<8x128xf32>
    %c128_i32 = arith.constant 128 : i32
    %175 = vector.broadcast %c128_i32 : i32 to vector<8x128xi32>
    %176 = arith.select %174, %172, %175 : vector<8x128xi1>, vector<8x128xi32>
    %cst_57 = arith.constant dense<2147483647> : vector<8xi32>
    %177 = vector.multi_reduction <minsi>, %176, %cst_57 [1] : vector<8x128xi32> to vector<8xi32>
    %178 = vector.shape_cast %177 : vector<8xi32> to vector<8x1xi32>
    %179 = vector.broadcast %178 : vector<8x1xi32> to vector<8x128xi32>
    %180 = arith.cmpi eq, %172, %179 : vector<8x128xi32>
    %181 = arith.extui %180 : vector<8x128xi1> to vector<8x128xi32>
    %182 = arith.sitofp %181 : vector<8x128xi32> to vector<8x128xf32>
    %183 = arith.mulf %135, %182 : vector<8x128xf32>
    %cst_58 = arith.constant dense<0.000000e+00> : vector<8xf32>
    %184 = vector.multi_reduction <add>, %183, %cst_58 [1] : vector<8x128xf32> to vector<8xf32>
    %185 = vector.shape_cast %184 : vector<8xf32> to vector<8x1xf32>
    %186 = vector.shape_cast %185 : vector<8x1xf32> to vector<1x8x1xf32>
    %cst_59 = arith.constant dense<0.000000e+00> : vector<1xf32>
    %187 = vector.multi_reduction <add>, %186, %cst_59 [1, 2] : vector<1x8x1xf32> to vector<1xf32>
    %188 = vector.shape_cast %187 : vector<1xf32> to vector<1x1x1xf32>
    %189 = vector.extract %188[0, 0, 0] : f32 from vector<1x1x1xf32>
    %190 = vector.broadcast %189 : f32 to vector<1x1xf32>
    %cst_60 = arith.constant 1.250000e-01 : f32
    %191 = vector.broadcast %cst_60 : f32 to vector<1x1xf32>
    %192 = arith.mulf %190, %191 : vector<1x1xf32>
    %193 = tpu.iota {dimensions = array<i32: 0>} : vector<8x128xi32>
    %194 = tpu.iota {dimensions = array<i32: 1>} : vector<8x128xi32>
    %c0_i32_61 = arith.constant 0 : i32
    %195 = vector.broadcast %c0_i32_61 : i32 to vector<8x128xi32>
    %196 = arith.cmpi eq, %194, %195 : vector<8x128xi32>
    %c1_i32_62 = arith.constant 1 : i32
    %197 = vector.broadcast %c1_i32_62 : i32 to vector<8x128xi32>
    %198 = arith.cmpi eq, %194, %197 : vector<8x128xi32>
    %cst_63 = arith.constant 0.000000e+00 : f32
    %199 = vector.shape_cast %192 : vector<1x1xf32> to vector<1x1xf32>
    %200 = vector.broadcast %199 : vector<1x1xf32> to vector<8x128xf32>
    %201 = vector.broadcast %cst_63 : f32 to vector<8x128xf32>
    %202 = arith.select %198, %200, %201 : vector<8x128xi1>, vector<8x128xf32>
    %203 = vector.shape_cast %162 : vector<1x1xf32> to vector<1x1xf32>
    %204 = vector.broadcast %203 : vector<1x1xf32> to vector<8x128xf32>
    %205 = arith.select %196, %204, %202 : vector<8x128xi1>, vector<8x128xf32>
    %c0_i32_64 = arith.constant 0 : i32
    %206 = vector.broadcast %c0_i32_64 : i32 to vector<8x128xi32>
    %207 = arith.cmpi eq, %193, %206 : vector<8x128xi32>
    %c1_i32_65 = arith.constant 1 : i32
    %208 = vector.broadcast %c1_i32_65 : i32 to vector<8x128xi32>
    %209 = arith.cmpi eq, %193, %208 : vector<8x128xi32>
    %cst_66 = arith.constant 0.000000e+00 : f32
    %210 = vector.broadcast %cst_66 : f32 to vector<8x128xf32>
    %211 = arith.select %209, %205, %210 : vector<8x128xi1>, vector<8x128xf32>
    %212 = vector.shape_cast %171 : vector<1x128xf32> to vector<1x128xf32>
    %213 = vector.broadcast %212 : vector<1x128xf32> to vector<8x128xf32>
    %214 = arith.select %207, %213, %211 : vector<8x128xi1>, vector<8x128xf32>
    %c0_67 = arith.constant 0 : index
    %c0_68 = arith.constant 0 : index
    %c0_69 = arith.constant 0 : index
    %215 = vector.load %arg9[%c0_67, %c0_68, %c0_69] : memref<1x8x128xf32, #tpu.memory_space<vmem>>, vector<1x8x128xf32>
    %216 = vector.shape_cast %215 : vector<1x8x128xf32> to vector<8x128xf32>
    %217 = vector.shape_cast %214 : vector<8x128xf32> to vector<1x8x128xf32>
    tpu.vector_store %arg9[%c0_67, %c0_68, %c0_69], %217 {strides = array<i32>} : memref<1x8x128xf32, #tpu.memory_space<vmem>>, vector<1x8x128xf32>,
    return
  }
  func.func @transform_0(%arg0: i32) -> i32 {
    %c0_i32 = arith.constant 0 : i32
    %c0_i32_0 = arith.constant 0 : i32
    return %c0_i32 : i32
  }
  func.func @transform_1(%arg0: i32) -> (i32, i32, i32) {
    %c0_i32 = arith.constant 0 : i32
    %c0_i32_0 = arith.constant 0 : i32
    %c0_i32_1 = arith.constant 0 : i32
    return %arg0, %c0_i32, %c0_i32_0 : i32, i32, i32
  }
  func.func @transform_2(%arg0: i32) -> (i32, i32, i32) {
    %c0_i32 = arith.constant 0 : i32
    %c0_i32_0 = arith.constant 0 : i32
    %c0_i32_1 = arith.constant 0 : i32
    return %arg0, %c0_i32, %c0_i32_0 : i32, i32, i32
  }
  func.func @transform_3(%arg0: i32) -> (i32, i32, i32) {
    %c0_i32 = arith.constant 0 : i32
    %c0_i32_0 = arith.constant 0 : i32
    %c0_i32_1 = arith.constant 0 : i32
    return %arg0, %c0_i32, %c0_i32_0 : i32, i32, i32
  }
  func.func @transform_4(%arg0: i32) -> (i32, i32, i32) {
    %c0_i32 = arith.constant 0 : i32
    %c0_i32_0 = arith.constant 0 : i32
    %c0_i32_1 = arith.constant 0 : i32
    return %arg0, %c0_i32, %c0_i32_0 : i32, i32, i32
  }
  func.func @transform_5(%arg0: i32) -> (i32, i32) {
    %c0_i32 = arith.constant 0 : i32
    %c0_i32_0 = arith.constant 0 : i32
    %c0_i32_1 = arith.constant 0 : i32
    return %c0_i32, %c0_i32_0 : i32, i32
  }
  func.func @transform_6(%arg0: i32) -> (i32, i32) {
    %c0_i32 = arith.constant 0 : i32
    %c0_i32_0 = arith.constant 0 : i32
    %c0_i32_1 = arith.constant 0 : i32
    return %c0_i32, %c0_i32_0 : i32, i32
  }
  func.func @transform_7(%arg0: i32) -> (i32, i32, i32) {
    %c0_i32 = arith.constant 0 : i32
    %c0_i32_0 = arith.constant 0 : i32
    %c0_i32_1 = arith.constant 0 : i32
    return %arg0, %c0_i32, %c0_i32_0 : i32, i32, i32
  }
  func.func @transform_8(%arg0: i32) -> (i32, i32, i32) {
    %c0_i32 = arith.constant 0 : i32
    %c0_i32_0 = arith.constant 0 : i32
    %c0_i32_1 = arith.constant 0 : i32
    return %arg0, %c0_i32, %c0_i32_0 : i32, i32, i32
  }
}

</mosaic_0001>

<llo_original>
// kernel: tpu_custom_call.1
$region0: #{tpu_custom_call.1}
  #allocation0 [shape = 'u32[]', space=smem, size = 0x4, offset = 0x4, fixed_abs, tag = 'smem constant byte address 0x4 - core index']
  #allocation1 [shape = 'u32[144,128]{1,0:T(1,128)}', space=vmem, size = 0x12000, scoped, tag = 'internal scratch']
  #allocation2 [shape = 'f32[1]{0:T(128)S(6)}', space=smem, size = 0x200, scoped, tag = 'scoped memory for tpu_custom_call.1']
  %s0 = inlined_call_operand.<no memory space> [shape: f32[1], index: 0, kind: input, shape index: {}]
  %s1 = inlined_call_operand.hbm [shape: f32[4,8,128], index: 1, kind: input, shape index: {}]
  %s2 = inlined_call_operand.hbm [shape: f32[4,8,128], index: 2, kind: input, shape index: {}]
  %s3 = inlined_call_operand.hbm [shape: f32[4,8,128], index: 3, kind: input, shape index: {}]
  %s4 = inlined_call_operand.hbm [shape: f32[4,8,128], index: 4, kind: input, shape index: {}]
  %s5 = inlined_call_operand.hbm [shape: f32[128,128], index: 5, kind: input, shape index: {}]
  %s6 = inlined_call_operand.vmem [shape: f32[1,128], index: 6, kind: input, shape index: {}]
  %s7 = inlined_call_operand.hbm [shape: f32[4,128,128], index: 7, kind: output, shape index: {0}]
  %s8 = inlined_call_operand.hbm [shape: f32[4,8,128], index: 8, kind: output, shape index: {1}]
  %9 = xla_tuple %s7, %s8
  %s10 = sld [smem:[#allocation0]]
  $region89: #{tpu_custom_call.1} parent=0
    _
  %s12 = ssub.s32 1, %s10
  %s13 = scalar_select 0, %s12, %s10
  %14 = sst [smem:[#allocation2]] %s0
  $region1: #{tpu_custom_call.1} parent=0
    #allocation3 [shape = 'u8[8192]{0}', space=vmem, size = 0x2000, scoped, tag = 'input window, operand 1']
    #allocation4 [shape = 's32[2]{0}', space=sflag, size = 0x8, scoped, tag = 'scoped memory for tpu_custom_call.1']
    #allocation5 [shape = 's32[2]{0}', space=sflag, size = 0x8, scoped, tag = 'scoped memory for tpu_custom_call.1']
    #allocation6 [shape = 'u8[8192]{0}', space=vmem, size = 0x2000, scoped, tag = 'input window, operand 2']
    #allocation7 [shape = 's32[2]{0}', space=sflag, size = 0x8, scoped, tag = 'scoped memory for tpu_custom_call.1']
    #allocation8 [shape = 'u8[8192]{0}', space=vmem, size = 0x2000, scoped, tag = 'input window, operand 3']
    #allocation9 [shape = 'u8[8192]{0}', space=vmem, size = 0x2000, scoped, tag = 'input window, operand 4']
    #allocation10 [shape = 's32[2]{0}', space=sflag, size = 0x8, scoped, tag = 'scoped memory for tpu_custom_call.1']
    #allocation11 [shape = 'u8[65536]{0}', space=vmem, size = 0x10000, scoped, tag = 'input window, operand 5, single buffered']
    #allocation12 [shape = 'u8[131072]{0}', space=vmem, size = 0x20000, scoped, tag = 'output window, operand 0']
    #allocation13 [shape = 'u8[8192]{0}', space=vmem, size = 0x2000, scoped, tag = 'output window, operand 1']
    #allocation14 [shape = 's32[2]{0}', space=sflag, size = 0x8, scoped, tag = 'scoped memory for tpu_custom_call.1']
    %15 = vsyncpa [#allocation4], 0
    %s16 = scalar_lea.sflag [#allocation4], 1
    %17 = vsyncpa %s16, 0
    %18 = vsyncpa [#allocation7], 0
    %s19 = scalar_lea.sflag [#allocation7], 1
    %20 = vsyncpa %s19, 0
    %21 = vsyncpa [#allocation10], 0
    %s22 = scalar_lea.sflag [#allocation10], 1
    %23 = vsyncpa %s22, 0
    %24 = vsyncpa [#allocation5], 0
    %s25 = scalar_lea.sflag [#allocation5], 1
    %26 = vsyncpa %s25, 0
    %27 = vsyncpa [#allocation14], 0
    %s28 = scalar_lea.sflag [#allocation14], 1
    %29 = vsyncpa %s28, 0
    loop: start=0, step=1, limit=6
    $region2: #{tpu_custom_call.1} parent=1 // loop_pre_header
      _
    $region3: #{tpu_custom_call.1} parent=1 // loop_header
      %s31 = sphi 0, %s35
      %p32 = scmp.ge.s32.totalorder %s31, 6
      %s39 = sphi 0, %s39
      %s41 = sphi 0, %s39
      %s42 = sphi 0, %s41
      %s56 = sphi 0, %s42
      %s62 = sphi 0, %s64
      %s65 = sphi 0, %s62
      %s66 = sphi 0, %s65
      %s82 = sphi 0, %s66
      %s88 = sphi 0, %s90
      %s91 = sphi 0, %s88
      %s92 = sphi 0, %s91
      %s108 = sphi 0, %s92
      %s114 = sphi 0, %s116
      %s117 = sphi 0, %s114
      %s118 = sphi 0, %s117
      %s134 = sphi 0, %s118
      %s140 = sphi 0, %s142
      %s143 = sphi 0, %s140
      %s144 = sphi 0, %s143
      %s160 = sphi 0, %s144
      %s164 = sphi 0, %s164
      %s166 = sphi 0, %s164
      %s167 = sphi 0, %s166
      %s181 = sphi 0, %s167
      %s185 = sphi 0, %s185
      %s187 = sphi 0, %s185
      %s188 = sphi 0, %s187
      %s202 = sphi 0, %s188
      %s208 = sphi 0, %s210
      %s211 = sphi 0, %s208
      %s212 = sphi 0, %s211
      %s228 = sphi 0, %s212
      %s234 = sphi 0, %s236
      %s237 = sphi 0, %s234
      %s238 = sphi 0, %s237
      %s254 = sphi 0, %s238
    $region4: #{tpu_custom_call.1} parent=1 // loop_header_branch
      %34 = sbr.rel (%p32) target = $region8
    $region5: #{tpu_custom_call.1} parent=1 // loop_body
      %s36 = ssub.s32 %s31, 1
      %s37 = ssub.s32 %s31, 2
      %s38 = sadd.s32 %s31, 1
      %s40 = sadd.s32 %s39, 1
      %p43 = scmp.eq.s32.totalorder %s31, 3
      %p44 = scmp.ne.s32.totalorder %s39, %s41
      %p45 = scmp.eq.s32.totalorder %s31, 0
      %p46 = por %p44, %p45
      %p47 = scmp.ne.s32.totalorder %s39, %s41
      %p48 = scmp.eq.s32.totalorder %s36, 3
      %p49 = por %p47, %p48
      %p50 = scmp.ne.s32.totalorder %s41, %s42
      %p51 = scmp.eq.s32.totalorder %s36, 0
      %p52 = por %p50, %p51
      %p53 = scmp.ne.s32.totalorder %s41, %s42
      %p54 = scmp.eq.s32.totalorder %s37, 3
      %p55 = por %p53, %p54
      %p57 = scmp.ne.s32.totalorder %s42, %s56
      %p58 = scmp.eq.s32.totalorder %s37, 0
      %p59 = por %p57, %p58
      %s60 = ssub.s32 %s31, %s38
      %p61 = scmp.eq.s32.totalorder %s60, 0
      %s63 = sadd.s32 %s62, 1
      %s64 = scalar_select %p61, %s62, %s63
      %p67 = pneg %p61
      %p68 = scmp.eq.s32.totalorder %s31, 3
      %p69 = por %p67, %p68
      %p70 = scmp.ne.s32.totalorder %s62, %s65
      %p71 = scmp.eq.s32.totalorder %s31, 0
      %p72 = por %p70, %p71
      %p73 = scmp.ne.s32.totalorder %s62, %s65
      %p74 = scmp.eq.s32.totalorder %s36, 3
      %p75 = por %p73, %p74
      %p76 = scmp.ne.s32.totalorder %s65, %s66
      %p77 = scmp.eq.s32.totalorder %s36, 0
      %p78 = por %p76, %p77
      %p79 = scmp.ne.s32.totalorder %s65, %s66
      %p80 = scmp.eq.s32.totalorder %s37, 3
      %p81 = por %p79, %p80
      %p83 = scmp.ne.s32.totalorder %s66, %s82
      %p84 = scmp.eq.s32.totalorder %s37, 0
      %p85 = por %p83, %p84
      %s86 = ssub.s32 %s31, %s38
      %p87 = scmp.eq.s32.totalorder %s86, 0
      %s89 = sadd.s32 %s88, 1
      %s90 = scalar_select %p87, %s88, %s89
      %p93 = pneg %p87
      %p94 = scmp.eq.s32.totalorder %s31, 3
      %p95 = por %p93, %p94
      %p96 = scmp.ne.s32.totalorder %s88, %s91
      %p97 = scmp.eq.s32.totalorder %s31, 0
      %p98 = por %p96, %p97
      %p99 = scmp.ne.s32.totalorder %s88, %s91
      %p100 = scmp.eq.s32.totalorder %s36, 3
      %p101 = por %p99, %p100
      %p102 = scmp.ne.s32.totalorder %s91, %s92
      %p103 = scmp.eq.s32.totalorder %s36, 0
      %p104 = por %p102, %p103
      %p105 = scmp.ne.s32.totalorder %s91, %s92
      %p106 = scmp.eq.s32.totalorder %s37, 3
      %p107 = por %p105, %p106
      %p109 = scmp.ne.s32.totalorder %s92, %s108
      %p110 = scmp.eq.s32.totalorder %s37, 0
      %p111 = por %p109, %p110
      %s112 = ssub.s32 %s31, %s38
      %p113 = scmp.eq.s32.totalorder %s112, 0
      %s115 = sadd.s32 %s114, 1
      %s116 = scalar_select %p113, %s114, %s115
      %p119 = pneg %p113
      %p120 = scmp.eq.s32.totalorder %s31, 3
      %p121 = por %p119, %p120
      %p122 = scmp.ne.s32.totalorder %s114, %s117
      %p123 = scmp.eq.s32.totalorder %s31, 0
      %p124 = por %p122, %p123
      %p125 = scmp.ne.s32.totalorder %s114, %s117
      %p126 = scmp.eq.s32.totalorder %s36, 3
      %p127 = por %p125, %p126
      %p128 = scmp.ne.s32.totalorder %s117, %s118
      %p129 = scmp.eq.s32.totalorder %s36, 0
      %p130 = por %p128, %p129
      %p131 = scmp.ne.s32.totalorder %s117, %s118
      %p132 = scmp.eq.s32.totalorder %s37, 3
      %p133 = por %p131, %p132
      %p135 = scmp.ne.s32.totalorder %s118, %s134
      %p136 = scmp.eq.s32.totalorder %s37, 0
      %p137 = por %p135, %p136
      %s138 = ssub.s32 %s31, %s38
      %p139 = scmp.eq.s32.totalorder %s138, 0
      %s141 = sadd.s32 %s140, 1
      %s142 = scalar_select %p139, %s140, %s141
      %p145 = pneg %p139
      %p146 = scmp.eq.s32.totalorder %s31, 3
      %p147 = por %p145, %p146
      %p148 = scmp.ne.s32.totalorder %s140, %s143
      %p149 = scmp.eq.s32.totalorder %s31, 0
      %p150 = por %p148, %p149
      %p151 = scmp.ne.s32.totalorder %s140, %s143
      %p152 = scmp.eq.s32.totalorder %s36, 3
      %p153 = por %p151, %p152
      %p154 = scmp.ne.s32.totalorder %s143, %s144
      %p155 = scmp.eq.s32.totalorder %s36, 0
      %p156 = por %p154, %p155
      %p157 = scmp.ne.s32.totalorder %s143, %s144
      %p158 = scmp.eq.s32.totalorder %s37, 3
      %p159 = por %p157, %p158
      %p161 = scmp.ne.s32.totalorder %s144, %s160
      %p162 = scmp.eq.s32.totalorder %s37, 0
      %p163 = por %p161, %p162
      %s165 = sadd.s32 %s164, 1
      %p168 = scmp.eq.s32.totalorder %s31, 3
      %p169 = scmp.ne.s32.totalorder %s164, %s166
      %p170 = scmp.eq.s32.totalorder %s31, 0
      %p171 = por %p169, %p170
      %p172 = scmp.ne.s32.totalorder %s164, %s166
      %p173 = scmp.eq.s32.totalorder %s36, 3
      %p174 = por %p172, %p173
      %p175 = scmp.ne.s32.totalorder %s166, %s167
      %p176 = scmp.eq.s32.totalorder %s36, 0
      %p177 = por %p175, %p176
      %p178 = scmp.ne.s32.totalorder %s166, %s167
      %p179 = scmp.eq.s32.totalorder %s37, 3
      %p180 = por %p178, %p179
      %p182 = scmp.ne.s32.totalorder %s167, %s181
      %p183 = scmp.eq.s32.totalorder %s37, 0
      %p184 = por %p182, %p183
      %s186 = sadd.s32 %s185, 1
      %p189 = scmp.eq.s32.totalorder %s31, 3
      %p190 = scmp.ne.s32.totalorder %s185, %s187
      %p191 = scmp.eq.s32.totalorder %s31, 0
      %p192 = por %p190, %p191
      %p193 = scmp.ne.s32.totalorder %s185, %s187
      %p194 = scmp.eq.s32.totalorder %s36, 3
      %p195 = por %p193, %p194
      %p196 = scmp.ne.s32.totalorder %s187, %s188
      %p197 = scmp.eq.s32.totalorder %s36, 0
      %p198 = por %p196, %p197
      %p199 = scmp.ne.s32.totalorder %s187, %s188
      %p200 = scmp.eq.s32.totalorder %s37, 3
      %p201 = por %p199, %p200
      %p203 = scmp.ne.s32.totalorder %s188, %s202
      %p204 = scmp.eq.s32.totalorder %s37, 0
      %p205 = por %p203, %p204
      %s206 = ssub.s32 %s31, %s38
      %p207 = scmp.eq.s32.totalorder %s206, 0
      %s209 = sadd.s32 %s208, 1
      %s210 = scalar_select %p207, %s208, %s209
      %p213 = pneg %p207
      %p214 = scmp.eq.s32.totalorder %s31, 3
      %p215 = por %p213, %p214
      %p216 = scmp.ne.s32.totalorder %s208, %s211
      %p217 = scmp.eq.s32.totalorder %s31, 0
      %p218 = por %p216, %p217
      %p219 = scmp.ne.s32.totalorder %s208, %s211
      %p220 = scmp.eq.s32.totalorder %s36, 3
      %p221 = por %p219, %p220
      %p222 = scmp.ne.s32.totalorder %s211, %s212
      %p223 = scmp.eq.s32.totalorder %s36, 0
      %p224 = por %p222, %p223
      %p225 = scmp.ne.s32.totalorder %s211, %s212
      %p226 = scmp.eq.s32.totalorder %s37, 3
      %p227 = por %p225, %p226
      %p229 = scmp.ne.s32.totalorder %s212, %s228
      %p230 = scmp.eq.s32.totalorder %s37, 0
      %p231 = por %p229, %p230
      %s232 = ssub.s32 %s31, %s38
      %p233 = scmp.eq.s32.totalorder %s232, 0
      %s235 = sadd.s32 %s234, 1
      %s236 = scalar_select %p233, %s234, %s235
      %p239 = pneg %p233
      %p240 = scmp.eq.s32.totalorder %s31, 3
      %p241 = por %p239, %p240
      %p242 = scmp.ne.s32.totalorder %s234, %s237
      %p243 = scmp.eq.s32.totalorder %s31, 0
      %p244 = por %p242, %p243
      %p245 = scmp.ne.s32.totalorder %s234, %s237
      %p246 = scmp.eq.s32.totalorder %s36, 3
      %p247 = por %p245, %p246
      %p248 = scmp.ne.s32.totalorder %s237, %s238
      %p249 = scmp.eq.s32.totalorder %s36, 0
      %p250 = por %p248, %p249
      %p251 = scmp.ne.s32.totalorder %s237, %s238
      %p252 = scmp.eq.s32.totalorder %s37, 3
      %p253 = por %p251, %p252
      %p255 = scmp.ne.s32.totalorder %s238, %s254
      %p256 = scmp.eq.s32.totalorder %s37, 0
      %p257 = por %p255, %p256
      %p258 = scmp.le.s32.totalorder 1, %s31
      %p259 = scmp.lt.s32.totalorder %s31, 5
      %p260 = pnand %p258, %p259
      %p261 = pneg %p260
      // Predicated region
      $region9: #{tpu_custom_call.1} parent=5 // pred_check
        _
      $region10: #{tpu_custom_call.1} parent=5 // pred_check_branch
        %263 = sbr.rel (%p260) target = $region12
      $region11: #{tpu_custom_call.1} parent=5 // pred_region
        %s264 = ssub.s32 %s31, 1
        // Predicated region
        $region13: #{tpu_custom_call.1} parent=11 // pred_check
          %p265 = pneg %p52
        $region14: #{tpu_custom_call.1} parent=11 // pred_check_branch
          %267 = sbr.rel (%p265) target = $region16
        $region15: #{tpu_custom_call.1} parent=11 // pred_region
          _
        $region16: #{tpu_custom_call.1} parent=11 // pred_fallthru
          _
        // Predicated region
        $region17: #{tpu_custom_call.1} parent=11 // pred_check
          %p268 = pneg %p177
        $region18: #{tpu_custom_call.1} parent=11 // pred_check_branch
          %270 = sbr.rel (%p268) target = $region20
        $region19: #{tpu_custom_call.1} parent=11 // pred_region
          %s272 = ssub.s32 2048, 2048
          %273 = vsyncadd [#allocation10], %s272
          %s274 = sshll.u32 [#allocation11], 4
          %s275 = int_to_ptr.vmem [resolvable:$true] %s274
          %280 = dma.hbm_to_vmem [thread:$0]  %s5, 2048, %s275, [#allocation10], 128, 128, 8
        $region20: #{tpu_custom_call.1} parent=11 // pred_fallthru
          _
        // Predicated region
        $region21: #{tpu_custom_call.1} parent=11 // pred_check
          %p281 = pneg %p198
        $region22: #{tpu_custom_call.1} parent=11 // pred_check_branch
          %283 = sbr.rel (%p281) target = $region24
        $region23: #{tpu_custom_call.1} parent=11 // pred_region
          _
        $region24: #{tpu_custom_call.1} parent=11 // pred_fallthru
          _
      $region12: #{tpu_custom_call.1} parent=5 // pred_fallthru
        _
      %p284 = scmp.lt.s32.totalorder %s31, 4
      // Predicated region
      $region25: #{tpu_custom_call.1} parent=5 // pred_check
        %p285 = pneg %p284
      $region26: #{tpu_custom_call.1} parent=5 // pred_check_branch
        %287 = sbr.rel (%p285) target = $region28
      $region27: #{tpu_custom_call.1} parent=5 // pred_region
        // Predicated region
        $region29: #{tpu_custom_call.1} parent=27 // pred_check
          %p288 = pneg %p72
        $region30: #{tpu_custom_call.1} parent=27 // pred_check_branch
          %290 = sbr.rel (%p288) target = $region32
        $region31: #{tpu_custom_call.1} parent=27 // pred_region
          %s291 = sand.u32 %s62, 1
          %s292 = scalar_lea.sflag [#allocation4], %s291
          %s293 = sand.u32 %s62, 1
          %s294 = smul.addr %s293, 8
          %s295 = scalar_lea.vmem [#allocation3], %s294
          %s297 = ssub.s32 128, 128
          %298 = vsyncadd %s292, %s297
          %s299 = smul.addr %s31, 128
          %s300 = scalar_lea.hbm %s1, %s299
          %s302 = sshll.u32 %s295, 4
          %s303 = int_to_ptr.vmem [resolvable:$true] %s302
          %305 = dma.hbm_to_vmem [thread:$0]  %s300, 128, %s303, %s292
        $region32: #{tpu_custom_call.1} parent=27 // pred_fallthru
          _
        // Predicated region
        $region33: #{tpu_custom_call.1} parent=27 // pred_check
          %p306 = pneg %p98
        $region34: #{tpu_custom_call.1} parent=27 // pred_check_branch
          %308 = sbr.rel (%p306) target = $region36
        $region35: #{tpu_custom_call.1} parent=27 // pred_region
          %s309 = sand.u32 %s31, 1
          %s310 = scalar_lea.sflag [#allocation7], %s309
          %s311 = sand.u32 %s88, 1
          %s312 = smul.addr %s311, 8
          %s313 = scalar_lea.vmem [#allocation6], %s312
          %s315 = ssub.s32 128, 128
          %316 = vsyncadd %s310, %s315
          %s317 = smul.addr %s31, 128
          %s318 = scalar_lea.hbm %s2, %s317
          %s320 = sshll.u32 %s313, 4
          %s321 = int_to_ptr.vmem [resolvable:$true] %s320
          %323 = dma.hbm_to_vmem [thread:$0]  %s318, 128, %s321, %s310
        $region36: #{tpu_custom_call.1} parent=27 // pred_fallthru
          _
        // Predicated region
        $region37: #{tpu_custom_call.1} parent=27 // pred_check
          %p324 = pneg %p124
        $region38: #{tpu_custom_call.1} parent=27 // pred_check_branch
          %326 = sbr.rel (%p324) target = $region40
        $region39: #{tpu_custom_call.1} parent=27 // pred_region
          %s327 = sand.u32 %s31, 1
          %s328 = scalar_lea.sflag [#allocation7], %s327
          %s329 = sand.u32 %s114, 1
          %s330 = smul.addr %s329, 8
          %s331 = scalar_lea.vmem [#allocation8], %s330
          %s333 = ssub.s32 128, 128
          %334 = vsyncadd %s328, %s333
          %s335 = smul.addr %s31, 128
          %s336 = scalar_lea.hbm %s3, %s335
          %s338 = sshll.u32 %s331, 4
          %s339 = int_to_ptr.vmem [resolvable:$true] %s338
          %341 = dma.hbm_to_vmem [thread:$0]  %s336, 128, %s339, %s328
        $region40: #{tpu_custom_call.1} parent=27 // pred_fallthru
          _
        // Predicated region
        $region41: #{tpu_custom_call.1} parent=27 // pred_check
          %p342 = pneg %p150
        $region42: #{tpu_custom_call.1} parent=27 // pred_check_branch
          %344 = sbr.rel (%p342) target = $region44
        $region43: #{tpu_custom_call.1} parent=27 // pred_region
          %s345 = sand.u32 %s31, 1
          %s346 = scalar_lea.sflag [#allocation10], %s345
          %s347 = sand.u32 %s140, 1
          %s348 = smul.addr %s347, 8
          %s349 = scalar_lea.vmem [#allocation9], %s348
          %s351 = ssub.s32 128, 128
          %352 = vsyncadd %s346, %s351
          %s353 = smul.addr %s31, 128
          %s354 = scalar_lea.hbm %s4, %s353
          %s356 = sshll.u32 %s349, 4
          %s357 = int_to_ptr.vmem [resolvable:$true] %s356
          %359 = dma.hbm_to_vmem [thread:$0]  %s354, 128, %s357, %s346
        $region44: #{tpu_custom_call.1} parent=27 // pred_fallthru
          _
      $region28: #{tpu_custom_call.1} parent=5 // pred_fallthru
        _
      %p360 = scmp.le.s32.totalorder 1, %s31
      %p361 = scmp.lt.s32.totalorder %s31, 5
      %p362 = pnand %p360, %p361
      %p363 = pneg %p362
      // Predicated region
      $region45: #{tpu_custom_call.1} parent=5 // pred_check
        _
      $region46: #{tpu_custom_call.1} parent=5 // pred_check_branch
        %365 = sbr.rel (%p362) target = $region48
      $region47: #{tpu_custom_call.1} parent=5 // pred_region
        %s366 = ssub.s32 %s31, 1
        %s367 = sand.u32 %s65, 1
        %s368 = scalar_lea.sflag [#allocation4], %s367
        %s369 = sand.u32 %s65, 1
        %s370 = smul.addr %s369, 8
        %s371 = scalar_lea.vmem [#allocation3], %s370
        // Predicated region
        $region49: #{tpu_custom_call.1} parent=47 // pred_check
          %p372 = pneg %p78
        $region50: #{tpu_custom_call.1} parent=47 // pred_check_branch
          %374 = sbr.rel (%p372) target = $region52
        $region51: #{tpu_custom_call.1} parent=47 // pred_region
          %375 = dma.done %s368, 128
        $region52: #{tpu_custom_call.1} parent=47 // pred_fallthru
          _
        %s376 = sand.u32 %s36, 1
        %s377 = scalar_lea.sflag [#allocation7], %s376
        %s378 = sand.u32 %s91, 1
        %s379 = smul.addr %s378, 8
        %s380 = scalar_lea.vmem [#allocation6], %s379
        // Predicated region
        $region53: #{tpu_custom_call.1} parent=47 // pred_check
          %p381 = pneg %p104
        $region54: #{tpu_custom_call.1} parent=47 // pred_check_branch
          %383 = sbr.rel (%p381) target = $region56
        $region55: #{tpu_custom_call.1} parent=47 // pred_region
          %384 = dma.done %s377, 128
        $region56: #{tpu_custom_call.1} parent=47 // pred_fallthru
          _
        %s385 = sand.u32 %s36, 1
        %s386 = scalar_lea.sflag [#allocation7], %s385
        %s387 = sand.u32 %s117, 1
        %s388 = smul.addr %s387, 8
        %s389 = scalar_lea.vmem [#allocation8], %s388
        // Predicated region
        $region57: #{tpu_custom_call.1} parent=47 // pred_check
          %p390 = pneg %p130
        $region58: #{tpu_custom_call.1} parent=47 // pred_check_branch
          %392 = sbr.rel (%p390) target = $region60
        $region59: #{tpu_custom_call.1} parent=47 // pred_region
          %393 = dma.done %s386, 128
        $region60: #{tpu_custom_call.1} parent=47 // pred_fallthru
          _
        %s394 = sand.u32 %s36, 1
        %s395 = scalar_lea.sflag [#allocation10], %s394
        %s396 = sand.u32 %s143, 1
        %s397 = smul.addr %s396, 8
        %s398 = scalar_lea.vmem [#allocation9], %s397
        // Predicated region
        $region61: #{tpu_custom_call.1} parent=47 // pred_check
          %p399 = pneg %p156
        $region62: #{tpu_custom_call.1} parent=47 // pred_check_branch
          %401 = sbr.rel (%p399) target = $region64
        $region63: #{tpu_custom_call.1} parent=47 // pred_region
          %402 = dma.done %s395, 128
        $region64: #{tpu_custom_call.1} parent=47 // pred_fallthru
          _
        // Predicated region
        $region65: #{tpu_custom_call.1} parent=47 // pred_check
          %p403 = pneg %p177
        $region66: #{tpu_custom_call.1} parent=47 // pred_check_branch
          %405 = sbr.rel (%p403) target = $region68
        $region67: #{tpu_custom_call.1} parent=47 // pred_region
          %406 = dma.done [#allocation10], 2048
        $region68: #{tpu_custom_call.1} parent=47 // pred_fallthru
          _
        %p407 = pneg %p52
        %p408 = pneg %p49
        %s409 = sand.u32 %s65, 1
        %s410 = scalar_lea.sflag [#allocation4], %s409
        %s411 = sand.u32 %s65, 1
        %s412 = smul.addr %s411, 8
        %s413 = scalar_lea.vmem [#allocation3], %s412
        %p414 = pneg %p78
        %p415 = pneg %p75
        %s416 = sand.u32 %s36, 1
        %s417 = scalar_lea.sflag [#allocation7], %s416
        %s418 = sand.u32 %s91, 1
        %s419 = smul.addr %s418, 8
        %s420 = scalar_lea.vmem [#allocation6], %s419
        %p421 = pneg %p104
        %p422 = pneg %p101
        %s423 = sand.u32 %s36, 1
        %s424 = scalar_lea.sflag [#allocation7], %s423
        %s425 = sand.u32 %s117, 1
        %s426 = smul.addr %s425, 8
        %s427 = scalar_lea.vmem [#allocation8], %s426
        %p428 = pneg %p130
        %p429 = pneg %p127
        %s430 = sand.u32 %s36, 1
        %s431 = scalar_lea.sflag [#allocation10], %s430
        %s432 = sand.u32 %s143, 1
        %s433 = smul.addr %s432, 8
        %s434 = scalar_lea.vmem [#allocation9], %s433
        %p435 = pneg %p156
        %p436 = pneg %p153
        %p437 = pneg %p177
        %p438 = pneg %p174
        %p439 = pneg %p198
        %p440 = pneg %p195
        %p441 = pneg %p224
        %p442 = pneg %p221
        %s443 = sand.u32 %s211, 1
        %s444 = scalar_lea.sflag [#allocation5], %s443
        %s445 = sand.u32 %s211, 1
        %s446 = smul.addr %s445, 128
        %s447 = scalar_lea.vmem [#allocation12], %s446
        %p448 = pneg %p250
        %p449 = pneg %p247
        %s450 = sand.u32 %s237, 1
        %s451 = scalar_lea.sflag [#allocation14], %s450
        %s452 = sand.u32 %s237, 1
        %s453 = smul.addr %s452, 8
        %s454 = scalar_lea.vmem [#allocation13], %s453
        %s455 = sld [smem:[#allocation2]]
        %v456 = vld [vmem:[%s371] sm:$0xff]
        %v457 = vld [vmem:[%s380] sm:$0xff]
        %v458 = vld [vmem:[#allocation11] sm:$0xff]
        %v459 = vld [vmem:[#allocation11 + $0x8] sm:$0xff]
        %v460 = vld [vmem:[#allocation11 + $0x10] sm:$0xff]
        %v461 = vld [vmem:[#allocation11 + $0x18] sm:$0xff]
        %v462 = vld [vmem:[#allocation11 + $0x20] sm:$0xff]
        %v463 = vld [vmem:[#allocation11 + $0x28] sm:$0xff]
        %v464 = vld [vmem:[#allocation11 + $0x30] sm:$0xff]
        %v465 = vld [vmem:[#allocation11 + $0x38] sm:$0xff]
        %v466 = vld [vmem:[#allocation11 + $0x40] sm:$0xff]
        %v467 = vld [vmem:[#allocation11 + $0x48] sm:$0xff]
        %v468 = vld [vmem:[#allocation11 + $0x50] sm:$0xff]
        %v469 = vld [vmem:[#allocation11 + $0x58] sm:$0xff]
        %v470 = vld [vmem:[#allocation11 + $0x60] sm:$0xff]
        %v471 = vld [vmem:[#allocation11 + $0x68] sm:$0xff]
        %v472 = vld [vmem:[#allocation11 + $0x70] sm:$0xff]
        %v473 = vld [vmem:[#allocation11 + $0x78] sm:$0xff]
        %v474 = vld [vmem:[%s6] sm:$0x1]
        %v476 = vlaneseq
        %v477 = vshrl.u32 %v476, 7
        %v478 = vsub.s32 0, %v477
        %v479 = vrot.slane %v474, %v478
        %481 = vmatprep.subr.mxu0 0.0
        %482 = vmatpush1.xpose.msra.mxu0 %v458
        %483 = vmatprep.subr.mxu0 0.0
        %484 = vmatpush1.xpose.msra.mxu0 %v459
        %485 = vmatprep.subr.mxu0 0.0
        %486 = vmatpush1.xpose.msra.mxu0 %v460
        %487 = vmatprep.subr.mxu0 0.0
        %488 = vmatpush1.xpose.msra.mxu0 %v461
        %489 = vmatprep.subr.mxu0 0.0
        %490 = vmatpush1.xpose.msra.mxu0 %v462
        %491 = vmatprep.subr.mxu0 0.0
        %492 = vmatpush1.xpose.msra.mxu0 %v463
        %493 = vmatprep.subr.mxu0 0.0
        %494 = vmatpush1.xpose.msra.mxu0 %v464
        %495 = vmatprep.subr.mxu0 0.0
        %496 = vmatpush1.xpose.msra.mxu0 %v465
        %497 = vmatprep.subr.mxu0 0.0
        %498 = vmatpush1.xpose.msra.mxu0 %v466
        %499 = vmatprep.subr.mxu0 0.0
        %500 = vmatpush1.xpose.msra.mxu0 %v467
        %501 = vmatprep.subr.mxu0 0.0
        %502 = vmatpush1.xpose.msra.mxu0 %v468
        %503 = vmatprep.subr.mxu0 0.0
        %504 = vmatpush1.xpose.msra.mxu0 %v469
        %505 = vmatprep.subr.mxu0 0.0
        %506 = vmatpush1.xpose.msra.mxu0 %v470
        %507 = vmatprep.subr.mxu0 0.0
        %508 = vmatpush1.xpose.msra.mxu0 %v471
        %509 = vmatprep.subr.mxu0 0.0
        %510 = vmatpush1.xpose.msra.mxu0 %v472
        %511 = vmatprep.subr.mxu0 0.0
        %512 = vmatpush1.xpose.msra.mxu0 %v473
        %513 = vmatprep.subr.mxu0 0.0
        %514 = vmatpush1.xpose.msra.mxu0 0.0
        %515 = vmatprep.subr.mxu0 0.0
        %516 = vmatpush1.xpose.msra.mxu0 0.0
        %517 = vmatprep.subr.mxu0 0.0
        %518 = vmatpush1.xpose.msra.mxu0 0.0
        %519 = vmatprep.subr.mxu0 0.0
        %520 = vmatpush1.xpose.msra.mxu0 0.0
        %521 = vmatprep.subr.mxu0 0.0
        %522 = vmatpush1.xpose.msra.mxu0 0.0
        %523 = vmatprep.subr.mxu0 0.0
        %524 = vmatpush1.xpose.msra.mxu0 0.0
        %525 = vmatprep.subr.mxu0 0.0
        %526 = vmatpush1.xpose.msra.mxu0 0.0
        %527 = vmatprep.subr.mxu0 0.0
        %528 = vmatpush1.xpose.msra.mxu0 0.0
        %529 = vmatprep.subr.mxu0 0.0
        %530 = vmatpush1.xpose.msra.mxu0 0.0
        %531 = vmatprep.subr.mxu0 0.0
        %532 = vmatpush1.xpose.msra.mxu0 0.0
        %533 = vmatprep.subr.mxu0 0.0
        %534 = vmatpush1.xpose.msra.mxu0 0.0
        %535 = vmatprep.subr.mxu0 0.0
        %536 = vmatpush1.xpose.msra.mxu0 0.0
        %537 = vmatprep.subr.mxu0 0.0
        %538 = vmatpush1.xpose.msra.mxu0 0.0
        %539 = vmatprep.subr.mxu0 0.0
        %540 = vmatpush1.xpose.msra.mxu0 0.0
        %541 = vmatprep.subr.mxu0 0.0
        %542 = vmatpush1.xpose.msra.mxu0 0.0
        %543 = vmatprep.subr.mxu0 0.0
        %544 = vmatpush1.xpose.msra.mxu0 0.0
        %545 = vmatprep.mubr.f32.mxu0 0.0
        %546 = vmatmul.mubr.f32.gmra.mrb[0].mxu0 %v456
        %v547 = vpop.f32.mrb[0].mxu0
        %v548 = vadd.f32 %v479, %v547
        %v549 = vpop.f32.mrb[0].mxu0
        %550 = vdwg.mxu0
        %551 = vmax.xlane.f32.xlu0 %v548
        %v552 = vpop.xlane.xlu0 %551
        %v553 = vsub.f32 %v548, %v552
        %v554 = vmul.f32 %v553, 1.442695
        %v555 = vpow.pop %v554
        %556 = vadd.xlane.f32.xlu0 %v555
        %v557 = vpop.xlane.xlu0 %556
        %v558 = vrcp.pop %v557
        %v559 = vmul.f32 %v555, %v558
        %v560 = vsub.f32 %v559, %v457
        %v561 = vmul.f32 %v560, 0.125
        %562 = vxpose.xlu0.b32.start [1/16] %v561, 128
        %563 = vxpose.xlu0.b32.cont [2/16] 0.0, 128
        %564 = vxpose.xlu0.b32.cont [3/16] 0.0, 128
        %565 = vxpose.xlu0.b32.cont [4/16] 0.0, 128
        %566 = vxpose.xlu0.b32.cont [5/16] 0.0, 128
        %567 = vxpose.xlu0.b32.cont [6/16] 0.0, 128
        %568 = vxpose.xlu0.b32.cont [7/16] 0.0, 128
        %569 = vxpose.xlu0.b32.cont [8/16] 0.0, 128
        %570 = vxpose.xlu0.b32.cont [9/16] 0.0, 128
        %571 = vxpose.xlu0.b32.cont [10/16] 0.0, 128
        %572 = vxpose.xlu0.b32.cont [11/16] 0.0, 128
        %573 = vxpose.xlu0.b32.cont [12/16] 0.0, 128
        %574 = vxpose.xlu0.b32.cont [13/16] 0.0, 128
        %575 = vxpose.xlu0.b32.cont [14/16] 0.0, 128
        %576 = vxpose.xlu0.b32.cont [15/16] 0.0, 128
        %577 = vxpose.xlu0.b32.end [16/16] 0.0, 128
        %v578 = vpop.trf.xlu0
        %v579 = vpop.trf.xlu0
        %v580 = vpop.trf.xlu0
        %v581 = vpop.trf.xlu0
        %v582 = vpop.trf.xlu0
        %v583 = vpop.trf.xlu0
        %v584 = vpop.trf.xlu0
        %v585 = vpop.trf.xlu0
        %v586 = vpop.trf.xlu0
        %v587 = vpop.trf.xlu0
        %v588 = vpop.trf.xlu0
        %v589 = vpop.trf.xlu0
        %v590 = vpop.trf.xlu0
        %v591 = vpop.trf.xlu0
        %v592 = vpop.trf.xlu0
        %v593 = vpop.trf.xlu0
        %vm594 = vcmask 64512
        %v596 = vsel %vm594, %v578, 0
        %v599 = vsel %vm594, %v579, 0
        %v602 = vsel %vm594, %v580, 0
        %v605 = vsel %vm594, %v581, 0
        %v608 = vsel %vm594, %v582, 0
        %v611 = vsel %vm594, %v583, 0
        %v614 = vsel %vm594, %v584, 0
        %v617 = vsel %vm594, %v585, 0
        %v620 = vsel %vm594, %v586, 0
        %v623 = vsel %vm594, %v587, 0
        %v626 = vsel %vm594, %v588, 0
        %v629 = vsel %vm594, %v589, 0
        %v632 = vsel %vm594, %v590, 0
        %v635 = vsel %vm594, %v591, 0
        %v638 = vsel %vm594, %v592, 0
        %v641 = vsel %vm594, %v593, 0
        %643 = vmatprep.subr.mxu0 0.0
        %644 = vmatpush1.msra.mxu0 %v456
        %645 = vmatprep.subr.mxu0 0.0
        %646 = vmatpush1.msra.mxu0 0.0
        %647 = vmatprep.subr.mxu0 0.0
        %648 = vmatpush1.msra.mxu0 0.0
        %649 = vmatprep.subr.mxu0 0.0
        %650 = vmatpush1.msra.mxu0 0.0
        %651 = vmatprep.subr.mxu0 0.0
        %652 = vmatpush1.msra.mxu0 0.0
        %653 = vmatprep.subr.mxu0 0.0
        %654 = vmatpush1.msra.mxu0 0.0
        %655 = vmatprep.subr.mxu0 0.0
        %656 = vmatpush1.msra.mxu0 0.0
        %657 = vmatprep.subr.mxu0 0.0
        %658 = vmatpush1.msra.mxu0 0.0
        %659 = vmatprep.subr.mxu0 0.0
        %660 = vmatpush1.msra.mxu0 0.0
        %661 = vmatprep.subr.mxu0 0.0
        %662 = vmatpush1.msra.mxu0 0.0
        %663 = vmatprep.subr.mxu0 0.0
        %664 = vmatpush1.msra.mxu0 0.0
        %665 = vmatprep.subr.mxu0 0.0
        %666 = vmatpush1.msra.mxu0 0.0
        %667 = vmatprep.subr.mxu0 0.0
        %668 = vmatpush1.msra.mxu0 0.0
        %669 = vmatprep.subr.mxu0 0.0
        %670 = vmatpush1.msra.mxu0 0.0
        %671 = vmatprep.subr.mxu0 0.0
        %672 = vmatpush1.msra.mxu0 0.0
        %673 = vmatprep.subr.mxu0 0.0
        %674 = vmatpush1.msra.mxu0 0.0
        %675 = vmatprep.subr.mxu0 0.0
        %676 = vmatpush1.msra.mxu0 0.0
        %677 = vmatprep.subr.mxu0 0.0
        %678 = vmatpush1.msra.mxu0 0.0
        %679 = vmatprep.subr.mxu0 0.0
        %680 = vmatpush1.msra.mxu0 0.0
        %681 = vmatprep.subr.mxu0 0.0
        %682 = vmatpush1.msra.mxu0 0.0
        %683 = vmatprep.subr.mxu0 0.0
        %684 = vmatpush1.msra.mxu0 0.0
        %685 = vmatprep.subr.mxu0 0.0
        %686 = vmatpush1.msra.mxu0 0.0
        %687 = vmatprep.subr.mxu0 0.0
        %688 = vmatpush1.msra.mxu0 0.0
        %689 = vmatprep.subr.mxu0 0.0
        %690 = vmatpush1.msra.mxu0 0.0
        %691 = vmatprep.subr.mxu0 0.0
        %692 = vmatpush1.msra.mxu0 0.0
        %693 = vmatprep.subr.mxu0 0.0
        %694 = vmatpush1.msra.mxu0 0.0
        %695 = vmatprep.subr.mxu0 0.0
        %696 = vmatpush1.msra.mxu0 0.0
        %697 = vmatprep.subr.mxu0 0.0
        %698 = vmatpush1.msra.mxu0 0.0
        %699 = vmatprep.subr.mxu0 0.0
        %700 = vmatpush1.msra.mxu0 0.0
        %701 = vmatprep.subr.mxu0 0.0
        %702 = vmatpush1.msra.mxu0 0.0
        %703 = vmatprep.subr.mxu0 0.0
        %704 = vmatpush1.msra.mxu0 0.0
        %705 = vmatprep.subr.mxu0 0.0
        %706 = vmatpush1.msra.mxu0 0.0
        %707 = vmatprep.mubr.f32.mxu0 0.0
        %708 = vmatmul.mubr.f32.gmra.mrb[0].mxu0 %v596
        %v709 = vpop.f32.mrb[0].mxu0
        %v710 = vadd.f32 0.0, %v709
        %v711 = vpop.f32.mrb[0].mxu0
        %712 = vmatprep.mubr.f32.mxu0 0.0
        %713 = vmatmul.mubr.f32.gmra.mrb[0].mxu0 %v599
        %v714 = vpop.f32.mrb[0].mxu0
        %v715 = vadd.f32 0.0, %v714
        %v716 = vpop.f32.mrb[0].mxu0
        %717 = vmatprep.mubr.f32.mxu0 0.0
        %718 = vmatmul.mubr.f32.gmra.mrb[0].mxu0 %v602
        %v719 = vpop.f32.mrb[0].mxu0
        %v720 = vadd.f32 0.0, %v719
        %v721 = vpop.f32.mrb[0].mxu0
        %722 = vmatprep.mubr.f32.mxu0 0.0
        %723 = vmatmul.mubr.f32.gmra.mrb[0].mxu0 %v605
        %v724 = vpop.f32.mrb[0].mxu0
        %v725 = vadd.f32 0.0, %v724
        %v726 = vpop.f32.mrb[0].mxu0
        %727 = vmatprep.mubr.f32.mxu0 0.0
        %728 = vmatmul.mubr.f32.gmra.mrb[0].mxu0 %v608
        %v729 = vpop.f32.mrb[0].mxu0
        %v730 = vadd.f32 0.0, %v729
        %v731 = vpop.f32.mrb[0].mxu0
        %732 = vmatprep.mubr.f32.mxu0 0.0
        %733 = vmatmul.mubr.f32.gmra.mrb[0].mxu0 %v611
        %v734 = vpop.f32.mrb[0].mxu0
        %v735 = vadd.f32 0.0, %v734
        %v736 = vpop.f32.mrb[0].mxu0
        %737 = vmatprep.mubr.f32.mxu0 0.0
        %738 = vmatmul.mubr.f32.gmra.mrb[0].mxu0 %v614
        %v739 = vpop.f32.mrb[0].mxu0
        %v740 = vadd.f32 0.0, %v739
        %v741 = vpop.f32.mrb[0].mxu0
        %742 = vmatprep.mubr.f32.mxu0 0.0
        %743 = vmatmul.mubr.f32.gmra.mrb[0].mxu0 %v617
        %v744 = vpop.f32.mrb[0].mxu0
        %v745 = vadd.f32 0.0, %v744
        %v746 = vpop.f32.mrb[0].mxu0
        %747 = vmatprep.mubr.f32.mxu0 0.0
        %748 = vmatmul.mubr.f32.gmra.mrb[0].mxu0 %v620
        %v749 = vpop.f32.mrb[0].mxu0
        %v750 = vadd.f32 0.0, %v749
        %v751 = vpop.f32.mrb[0].mxu0
        %752 = vmatprep.mubr.f32.mxu0 0.0
        %753 = vmatmul.mubr.f32.gmra.mrb[0].mxu0 %v623
        %v754 = vpop.f32.mrb[0].mxu0
        %v755 = vadd.f32 0.0, %v754
        %v756 = vpop.f32.mrb[0].mxu0
        %757 = vmatprep.mubr.f32.mxu0 0.0
        %758 = vmatmul.mubr.f32.gmra.mrb[0].mxu0 %v626
        %v759 = vpop.f32.mrb[0].mxu0
        %v760 = vadd.f32 0.0, %v759
        %v761 = vpop.f32.mrb[0].mxu0
        %762 = vmatprep.mubr.f32.mxu0 0.0
        %763 = vmatmul.mubr.f32.gmra.mrb[0].mxu0 %v629
        %v764 = vpop.f32.mrb[0].mxu0
        %v765 = vadd.f32 0.0, %v764
        %v766 = vpop.f32.mrb[0].mxu0
        %767 = vmatprep.mubr.f32.mxu0 0.0
        %768 = vmatmul.mubr.f32.gmra.mrb[0].mxu0 %v632
        %v769 = vpop.f32.mrb[0].mxu0
        %v770 = vadd.f32 0.0, %v769
        %v771 = vpop.f32.mrb[0].mxu0
        %772 = vmatprep.mubr.f32.mxu0 0.0
        %773 = vmatmul.mubr.f32.gmra.mrb[0].mxu0 %v635
        %v774 = vpop.f32.mrb[0].mxu0
        %v775 = vadd.f32 0.0, %v774
        %v776 = vpop.f32.mrb[0].mxu0
        %777 = vmatprep.mubr.f32.mxu0 0.0
        %778 = vmatmul.mubr.f32.gmra.mrb[0].mxu0 %v638
        %v779 = vpop.f32.mrb[0].mxu0
        %v780 = vadd.f32 0.0, %v779
        %v781 = vpop.f32.mrb[0].mxu0
        %782 = vmatprep.mubr.f32.mxu0 0.0
        %783 = vmatmul.mubr.f32.gmra.mrb[0].mxu0 %v641
        %v784 = vpop.f32.mrb[0].mxu0
        %v785 = vadd.f32 0.0, %v784
        %v786 = vpop.f32.mrb[0].mxu0
        %787 = vdwg.mxu0
        %v788 = vrot.slane %v561, 4
        %v789 = vadd.f32 %v561, %v788
        %v790 = vrot.slane %v789, 2
        %v791 = vadd.f32 %v789, %v790
        %v792 = vrot.slane %v791, 1
        %v793 = vadd.f32 %v791, %v792
        %v794 = vstv %s455
        %v795 = vmul.f32 %v794, %v710
        %v796 = vmul.f32 %v794, %v715
        %v797 = vmul.f32 %v794, %v720
        %v798 = vmul.f32 %v794, %v725
        %v799 = vmul.f32 %v794, %v730
        %v800 = vmul.f32 %v794, %v735
        %v801 = vmul.f32 %v794, %v740
        %v802 = vmul.f32 %v794, %v745
        %v803 = vmul.f32 %v794, %v750
        %v804 = vmul.f32 %v794, %v755
        %v805 = vmul.f32 %v794, %v760
        %v806 = vmul.f32 %v794, %v765
        %v807 = vmul.f32 %v794, %v770
        %v808 = vmul.f32 %v794, %v775
        %v809 = vmul.f32 %v794, %v780
        %v810 = vmul.f32 %v794, %v785
        %v811 = vsub.f32 %v458, %v795
        %v812 = vsub.f32 %v459, %v796
        %v813 = vsub.f32 %v460, %v797
        %v814 = vsub.f32 %v461, %v798
        %v815 = vsub.f32 %v462, %v799
        %v816 = vsub.f32 %v463, %v800
        %v817 = vsub.f32 %v464, %v801
        %v818 = vsub.f32 %v465, %v802
        %v819 = vsub.f32 %v466, %v803
        %v820 = vsub.f32 %v467, %v804
        %v821 = vsub.f32 %v468, %v805
        %v822 = vsub.f32 %v469, %v806
        %v823 = vsub.f32 %v470, %v807
        %v824 = vsub.f32 %v471, %v808
        %v825 = vsub.f32 %v472, %v809
        %v826 = vsub.f32 %v473, %v810
        %v827 = vmul.f32 %v794, %v793
        %v828 = vsub.f32 %v474, %v827
        %v830 = vlaneseq
        %v831 = vshrl.u32 %v830, 7
        %v832 = vsub.s32 0, %v831
        %v833 = vrot.slane %v828, %v832
        %835 = vmatprep.subr.mxu0 0.0
        %836 = vmatpush1.xpose.msra.mxu0 %v811
        %837 = vmatprep.subr.mxu0 0.0
        %838 = vmatpush1.xpose.msra.mxu0 %v812
        %839 = vmatprep.subr.mxu0 0.0
        %840 = vmatpush1.xpose.msra.mxu0 %v813
        %841 = vmatprep.subr.mxu0 0.0
        %842 = vmatpush1.xpose.msra.mxu0 %v814
        %843 = vmatprep.subr.mxu0 0.0
        %844 = vmatpush1.xpose.msra.mxu0 %v815
        %845 = vmatprep.subr.mxu0 0.0
        %846 = vmatpush1.xpose.msra.mxu0 %v816
        %847 = vmatprep.subr.mxu0 0.0
        %848 = vmatpush1.xpose.msra.mxu0 %v817
        %849 = vmatprep.subr.mxu0 0.0
        %850 = vmatpush1.xpose.msra.mxu0 %v818
        %851 = vmatprep.subr.mxu0 0.0
        %852 = vmatpush1.xpose.msra.mxu0 %v819
        %853 = vmatprep.subr.mxu0 0.0
        %854 = vmatpush1.xpose.msra.mxu0 %v820
        %855 = vmatprep.subr.mxu0 0.0
        %856 = vmatpush1.xpose.msra.mxu0 %v821
        %857 = vmatprep.subr.mxu0 0.0
        %858 = vmatpush1.xpose.msra.mxu0 %v822
        %859 = vmatprep.subr.mxu0 0.0
        %860 = vmatpush1.xpose.msra.mxu0 %v823
        %861 = vmatprep.subr.mxu0 0.0
        %862 = vmatpush1.xpose.msra.mxu0 %v824
        %863 = vmatprep.subr.mxu0 0.0
        %864 = vmatpush1.xpose.msra.mxu0 %v825
        %865 = vmatprep.subr.mxu0 0.0
        %866 = vmatpush1.xpose.msra.mxu0 %v826
        %867 = vmatprep.subr.mxu0 0.0
        %868 = vmatpush1.xpose.msra.mxu0 0.0
        %869 = vmatprep.subr.mxu0 0.0
        %870 = vmatpush1.xpose.msra.mxu0 0.0
        %871 = vmatprep.subr.mxu0 0.0
        %872 = vmatpush1.xpose.msra.mxu0 0.0
        %873 = vmatprep.subr.mxu0 0.0
        %874 = vmatpush1.xpose.msra.mxu0 0.0
        %875 = vmatprep.subr.mxu0 0.0
        %876 = vmatpush1.xpose.msra.mxu0 0.0
        %877 = vmatprep.subr.mxu0 0.0
        %878 = vmatpush1.xpose.msra.mxu0 0.0
        %879 = vmatprep.subr.mxu0 0.0
        %880 = vmatpush1.xpose.msra.mxu0 0.0
        %881 = vmatprep.subr.mxu0 0.0
        %882 = vmatpush1.xpose.msra.mxu0 0.0
        %883 = vmatprep.subr.mxu0 0.0
        %884 = vmatpush1.xpose.msra.mxu0 0.0
        %885 = vmatprep.subr.mxu0 0.0
        %886 = vmatpush1.xpose.msra.mxu0 0.0
        %887 = vmatprep.subr.mxu0 0.0
        %888 = vmatpush1.xpose.msra.mxu0 0.0
        %889 = vmatprep.subr.mxu0 0.0
        %890 = vmatpush1.xpose.msra.mxu0 0.0
        %891 = vmatprep.subr.mxu0 0.0
        %892 = vmatpush1.xpose.msra.mxu0 0.0
        %893 = vmatprep.subr.mxu0 0.0
        %894 = vmatpush1.xpose.msra.mxu0 0.0
        %895 = vmatprep.subr.mxu0 0.0
        %896 = vmatpush1.xpose.msra.mxu0 0.0
        %897 = vmatprep.subr.mxu0 0.0
        %898 = vmatpush1.xpose.msra.mxu0 0.0
        %899 = vmatprep.mubr.f32.mxu0 0.0
        %900 = vmatmul.mubr.f32.gmra.mrb[0].mxu0 %v456
        %v901 = vpop.f32.mrb[0].mxu0
        %v902 = vadd.f32 %v833, %v901
        %v903 = vpop.f32.mrb[0].mxu0
        %904 = vdwg.mxu0
        %905 = vmax.xlane.f32.xlu0 %v902
        %v906 = vpop.xlane.xlu0 %905
        %v907 = vsub.f32 %v902, %v906
        %v908 = vmul.f32 %v907, 1.442695
        %v909 = vpow.pop %v908
        %910 = vadd.xlane.f32.xlu0 %v909
        %v911 = vpop.xlane.xlu0 %910
        %v912 = vrcp.pop %v911
        %v913 = vmul.f32 %v909, %v912
        %v914 = vsub.f32 %v913, %v457
        %v915 = vmul.f32 %v914, 0.125
        %916 = vxpose.xlu0.b32.start [1/16] %v915, 128
        %917 = vxpose.xlu0.b32.cont [2/16] 0.0, 128
        %918 = vxpose.xlu0.b32.cont [3/16] 0.0, 128
        %919 = vxpose.xlu0.b32.cont [4/16] 0.0, 128
        %920 = vxpose.xlu0.b32.cont [5/16] 0.0, 128
        %921 = vxpose.xlu0.b32.cont [6/16] 0.0, 128
        %922 = vxpose.xlu0.b32.cont [7/16] 0.0, 128
        %923 = vxpose.xlu0.b32.cont [8/16] 0.0, 128
        %924 = vxpose.xlu0.b32.cont [9/16] 0.0, 128
        %925 = vxpose.xlu0.b32.cont [10/16] 0.0, 128
        %926 = vxpose.xlu0.b32.cont [11/16] 0.0, 128
        %927 = vxpose.xlu0.b32.cont [12/16] 0.0, 128
        %928 = vxpose.xlu0.b32.cont [13/16] 0.0, 128
        %929 = vxpose.xlu0.b32.cont [14/16] 0.0, 128
        %930 = vxpose.xlu0.b32.cont [15/16] 0.0, 128
        %931 = vxpose.xlu0.b32.end [16/16] 0.0, 128
        %v932 = vpop.trf.xlu0
        %v933 = vpop.trf.xlu0
        %v934 = vpop.trf.xlu0
        %v935 = vpop.trf.xlu0
        %v936 = vpop.trf.xlu0
        %v937 = vpop.trf.xlu0
        %v938 = vpop.trf.xlu0
        %v939 = vpop.trf.xlu0
        %v940 = vpop.trf.xlu0
        %v941 = vpop.trf.xlu0
        %v942 = vpop.trf.xlu0
        %v943 = vpop.trf.xlu0
        %v944 = vpop.trf.xlu0
        %v945 = vpop.trf.xlu0
        %v946 = vpop.trf.xlu0
        %v947 = vpop.trf.xlu0
        %v949 = vsel %vm594, %v932, 0
        %v952 = vsel %vm594, %v933, 0
        %v955 = vsel %vm594, %v934, 0
        %v958 = vsel %vm594, %v935, 0
        %v961 = vsel %vm594, %v936, 0
        %v964 = vsel %vm594, %v937, 0
        %v967 = vsel %vm594, %v938, 0
        %v970 = vsel %vm594, %v939, 0
        %v973 = vsel %vm594, %v940, 0
        %v976 = vsel %vm594, %v941, 0
        %v979 = vsel %vm594, %v942, 0
        %v982 = vsel %vm594, %v943, 0
        %v985 = vsel %vm594, %v944, 0
        %v988 = vsel %vm594, %v945, 0
        %v991 = vsel %vm594, %v946, 0
        %v994 = vsel %vm594, %v947, 0
        %996 = vmatprep.subr.mxu0 0.0
        %997 = vmatpush1.msra.mxu0 %v456
        %998 = vmatprep.subr.mxu0 0.0
        %999 = vmatpush1.msra.mxu0 0.0
        %1000 = vmatprep.subr.mxu0 0.0
        %1001 = vmatpush1.msra.mxu0 0.0
        %1002 = vmatprep.subr.mxu0 0.0
        %1003 = vmatpush1.msra.mxu0 0.0
        %1004 = vmatprep.subr.mxu0 0.0
        %1005 = vmatpush1.msra.mxu0 0.0
        %1006 = vmatprep.subr.mxu0 0.0
        %1007 = vmatpush1.msra.mxu0 0.0
        %1008 = vmatprep.subr.mxu0 0.0
        %1009 = vmatpush1.msra.mxu0 0.0
        %1010 = vmatprep.subr.mxu0 0.0
        %1011 = vmatpush1.msra.mxu0 0.0
        %1012 = vmatprep.subr.mxu0 0.0
        %1013 = vmatpush1.msra.mxu0 0.0
        %1014 = vmatprep.subr.mxu0 0.0
        %1015 = vmatpush1.msra.mxu0 0.0
        %1016 = vmatprep.subr.mxu0 0.0
        %1017 = vmatpush1.msra.mxu0 0.0
        %1018 = vmatprep.subr.mxu0 0.0
        %1019 = vmatpush1.msra.mxu0 0.0
        %1020 = vmatprep.subr.mxu0 0.0
        %1021 = vmatpush1.msra.mxu0 0.0
        %1022 = vmatprep.subr.mxu0 0.0
        %1023 = vmatpush1.msra.mxu0 0.0
        %1024 = vmatprep.subr.mxu0 0.0
        %1025 = vmatpush1.msra.mxu0 0.0
        %1026 = vmatprep.subr.mxu0 0.0
        %1027 = vmatpush1.msra.mxu0 0.0
        %1028 = vmatprep.subr.mxu0 0.0
        %1029 = vmatpush1.msra.mxu0 0.0
        %1030 = vmatprep.subr.mxu0 0.0
        %1031 = vmatpush1.msra.mxu0 0.0
        %1032 = vmatprep.subr.mxu0 0.0
        %1033 = vmatpush1.msra.mxu0 0.0
        %1034 = vmatprep.subr.mxu0 0.0
        %1035 = vmatpush1.msra.mxu0 0.0
        %1036 = vmatprep.subr.mxu0 0.0
        %1037 = vmatpush1.msra.mxu0 0.0
        %1038 = vmatprep.subr.mxu0 0.0
        %1039 = vmatpush1.msra.mxu0 0.0
        %1040 = vmatprep.subr.mxu0 0.0
        %1041 = vmatpush1.msra.mxu0 0.0
        %1042 = vmatprep.subr.mxu0 0.0
        %1043 = vmatpush1.msra.mxu0 0.0
        %1044 = vmatprep.subr.mxu0 0.0
        %1045 = vmatpush1.msra.mxu0 0.0
        %1046 = vmatprep.subr.mxu0 0.0
        %1047 = vmatpush1.msra.mxu0 0.0
        %1048 = vmatprep.subr.mxu0 0.0
        %1049 = vmatpush1.msra.mxu0 0.0
        %1050 = vmatprep.subr.mxu0 0.0
        %1051 = vmatpush1.msra.mxu0 0.0
        %1052 = vmatprep.subr.mxu0 0.0
        %1053 = vmatpush1.msra.mxu0 0.0
        %1054 = vmatprep.subr.mxu0 0.0
        %1055 = vmatpush1.msra.mxu0 0.0
        %1056 = vmatprep.subr.mxu0 0.0
        %1057 = vmatpush1.msra.mxu0 0.0
        %1058 = vmatprep.subr.mxu0 0.0
        %1059 = vmatpush1.msra.mxu0 0.0
        %1060 = vmatprep.mubr.f32.mxu0 0.0
        %1061 = vmatmul.mubr.f32.gmra.mrb[0].mxu0 %v949
        %v1062 = vpop.f32.mrb[0].mxu0
        %v1063 = vadd.f32 0.0, %v1062
        %v1064 = vpop.f32.mrb[0].mxu0
        %1065 = vmatprep.mubr.f32.mxu0 0.0
        %1066 = vmatmul.mubr.f32.gmra.mrb[0].mxu0 %v952
        %v1067 = vpop.f32.mrb[0].mxu0
        %v1068 = vadd.f32 0.0, %v1067
        %v1069 = vpop.f32.mrb[0].mxu0
        %1070 = vmatprep.mubr.f32.mxu0 0.0
        %1071 = vmatmul.mubr.f32.gmra.mrb[0].mxu0 %v955
        %v1072 = vpop.f32.mrb[0].mxu0
        %v1073 = vadd.f32 0.0, %v1072
        %v1074 = vpop.f32.mrb[0].mxu0
        %1075 = vmatprep.mubr.f32.mxu0 0.0
        %1076 = vmatmul.mubr.f32.gmra.mrb[0].mxu0 %v958
        %v1077 = vpop.f32.mrb[0].mxu0
        %v1078 = vadd.f32 0.0, %v1077
        %v1079 = vpop.f32.mrb[0].mxu0
        %1080 = vmatprep.mubr.f32.mxu0 0.0
        %1081 = vmatmul.mubr.f32.gmra.mrb[0].mxu0 %v961
        %v1082 = vpop.f32.mrb[0].mxu0
        %v1083 = vadd.f32 0.0, %v1082
        %v1084 = vpop.f32.mrb[0].mxu0
        %1085 = vmatprep.mubr.f32.mxu0 0.0
        %1086 = vmatmul.mubr.f32.gmra.mrb[0].mxu0 %v964
        %v1087 = vpop.f32.mrb[0].mxu0
        %v1088 = vadd.f32 0.0, %v1087
        %v1089 = vpop.f32.mrb[0].mxu0
        %1090 = vmatprep.mubr.f32.mxu0 0.0
        %1091 = vmatmul.mubr.f32.gmra.mrb[0].mxu0 %v967
        %v1092 = vpop.f32.mrb[0].mxu0
        %v1093 = vadd.f32 0.0, %v1092
        %v1094 = vpop.f32.mrb[0].mxu0
        %1095 = vmatprep.mubr.f32.mxu0 0.0
        %1096 = vmatmul.mubr.f32.gmra.mrb[0].mxu0 %v970
        %v1097 = vpop.f32.mrb[0].mxu0
        %v1098 = vadd.f32 0.0, %v1097
        %v1099 = vpop.f32.mrb[0].mxu0
        %1100 = vmatprep.mubr.f32.mxu0 0.0
        %1101 = vmatmul.mubr.f32.gmra.mrb[0].mxu0 %v973
        %v1102 = vpop.f32.mrb[0].mxu0
        %v1103 = vadd.f32 0.0, %v1102
        %v1104 = vpop.f32.mrb[0].mxu0
        %1105 = vmatprep.mubr.f32.mxu0 0.0
        %1106 = vmatmul.mubr.f32.gmra.mrb[0].mxu0 %v976
        %v1107 = vpop.f32.mrb[0].mxu0
        %v1108 = vadd.f32 0.0, %v1107
        %v1109 = vpop.f32.mrb[0].mxu0
        %1110 = vmatprep.mubr.f32.mxu0 0.0
        %1111 = vmatmul.mubr.f32.gmra.mrb[0].mxu0 %v979
        %v1112 = vpop.f32.mrb[0].mxu0
        %v1113 = vadd.f32 0.0, %v1112
        %v1114 = vpop.f32.mrb[0].mxu0
        %1115 = vmatprep.mubr.f32.mxu0 0.0
        %1116 = vmatmul.mubr.f32.gmra.mrb[0].mxu0 %v982
        %v1117 = vpop.f32.mrb[0].mxu0
        %v1118 = vadd.f32 0.0, %v1117
        %v1119 = vpop.f32.mrb[0].mxu0
        %1120 = vmatprep.mubr.f32.mxu0 0.0
        %1121 = vmatmul.mubr.f32.gmra.mrb[0].mxu0 %v985
        %v1122 = vpop.f32.mrb[0].mxu0
        %v1123 = vadd.f32 0.0, %v1122
        %v1124 = vpop.f32.mrb[0].mxu0
        %1125 = vmatprep.mubr.f32.mxu0 0.0
        %1126 = vmatmul.mubr.f32.gmra.mrb[0].mxu0 %v988
        %v1127 = vpop.f32.mrb[0].mxu0
        %v1128 = vadd.f32 0.0, %v1127
        %v1129 = vpop.f32.mrb[0].mxu0
        %1130 = vmatprep.mubr.f32.mxu0 0.0
        %1131 = vmatmul.mubr.f32.gmra.mrb[0].mxu0 %v991
        %v1132 = vpop.f32.mrb[0].mxu0
        %v1133 = vadd.f32 0.0, %v1132
        %v1134 = vpop.f32.mrb[0].mxu0
        %1135 = vmatprep.mubr.f32.mxu0 0.0
        %1136 = vmatmul.mubr.f32.gmra.mrb[0].mxu0 %v994
        %v1137 = vpop.f32.mrb[0].mxu0
        %v1138 = vadd.f32 0.0, %v1137
        %v1139 = vpop.f32.mrb[0].mxu0
        %1140 = vdwg.mxu0
        %v1141 = vrot.slane %v915, 4
        %v1142 = vadd.f32 %v915, %v1141
        %v1143 = vrot.slane %v1142, 2
        %v1144 = vadd.f32 %v1142, %v1143
        %v1145 = vrot.slane %v1144, 1
        %v1146 = vadd.f32 %v1144, %v1145
        %v1147 = vmul.f32 %v794, %v1063
        %v1148 = vmul.f32 %v794, %v1068
        %v1149 = vmul.f32 %v794, %v1073
        %v1150 = vmul.f32 %v794, %v1078
        %v1151 = vmul.f32 %v794, %v1083
        %v1152 = vmul.f32 %v794, %v1088
        %v1153 = vmul.f32 %v794, %v1093
        %v1154 = vmul.f32 %v794, %v1098
        %v1155 = vmul.f32 %v794, %v1103
        %v1156 = vmul.f32 %v794, %v1108
        %v1157 = vmul.f32 %v794, %v1113
        %v1158 = vmul.f32 %v794, %v1118
        %v1159 = vmul.f32 %v794, %v1123
        %v1160 = vmul.f32 %v794, %v1128
        %v1161 = vmul.f32 %v794, %v1133
        %v1162 = vmul.f32 %v794, %v1138
        %v1163 = vsub.f32 %v811, %v1147
        %v1164 = vsub.f32 %v812, %v1148
        %v1165 = vsub.f32 %v813, %v1149
        %v1166 = vsub.f32 %v814, %v1150
        %v1167 = vsub.f32 %v815, %v1151
        %v1168 = vsub.f32 %v816, %v1152
        %v1169 = vsub.f32 %v817, %v1153
        %v1170 = vsub.f32 %v818, %v1154
        %v1171 = vsub.f32 %v819, %v1155
        %v1172 = vsub.f32 %v820, %v1156
        %v1173 = vsub.f32 %v821, %v1157
        %v1174 = vsub.f32 %v822, %v1158
        %v1175 = vsub.f32 %v823, %v1159
        %v1176 = vsub.f32 %v824, %v1160
        %v1177 = vsub.f32 %v825, %v1161
        %v1178 = vsub.f32 %v826, %v1162
        %v1179 = vmul.f32 %v794, %v1146
        %v1180 = vsub.f32 %v828, %v1179
        %v1182 = vlaneseq
        %v1183 = vshrl.u32 %v1182, 7
        %v1184 = vsub.s32 0, %v1183
        %v1185 = vrot.slane %v1180, %v1184
        %1187 = vmatprep.subr.mxu0 0.0
        %1188 = vmatpush1.xpose.msra.mxu0 %v1163
        %1189 = vmatprep.subr.mxu0 0.0
        %1190 = vmatpush1.xpose.msra.mxu0 %v1164
        %1191 = vmatprep.subr.mxu0 0.0
        %1192 = vmatpush1.xpose.msra.mxu0 %v1165
        %1193 = vmatprep.subr.mxu0 0.0
        %1194 = vmatpush1.xpose.msra.mxu0 %v1166
        %1195 = vmatprep.subr.mxu0 0.0
        %1196 = vmatpush1.xpose.msra.mxu0 %v1167
        %1197 = vmatprep.subr.mxu0 0.0
        %1198 = vmatpush1.xpose.msra.mxu0 %v1168
        %1199 = vmatprep.subr.mxu0 0.0
        %1200 = vmatpush1.xpose.msra.mxu0 %v1169
        %1201 = vmatprep.subr.mxu0 0.0
        %1202 = vmatpush1.xpose.msra.mxu0 %v1170
        %1203 = vmatprep.subr.mxu0 0.0
        %1204 = vmatpush1.xpose.msra.mxu0 %v1171
        %1205 = vmatprep.subr.mxu0 0.0
        %1206 = vmatpush1.xpose.msra.mxu0 %v1172
        %1207 = vmatprep.subr.mxu0 0.0
        %1208 = vmatpush1.xpose.msra.mxu0 %v1173
        %1209 = vmatprep.subr.mxu0 0.0
        %1210 = vmatpush1.xpose.msra.mxu0 %v1174
        %1211 = vmatprep.subr.mxu0 0.0
        %1212 = vmatpush1.xpose.msra.mxu0 %v1175
        %1213 = vmatprep.subr.mxu0 0.0
        %1214 = vmatpush1.xpose.msra.mxu0 %v1176
        %1215 = vmatprep.subr.mxu0 0.0
        %1216 = vmatpush1.xpose.msra.mxu0 %v1177
        %1217 = vmatprep.subr.mxu0 0.0
        %1218 = vmatpush1.xpose.msra.mxu0 %v1178
        %1219 = vmatprep.subr.mxu0 0.0
        %1220 = vmatpush1.xpose.msra.mxu0 0.0
        %1221 = vmatprep.subr.mxu0 0.0
        %1222 = vmatpush1.xpose.msra.mxu0 0.0
        %1223 = vmatprep.subr.mxu0 0.0
        %1224 = vmatpush1.xpose.msra.mxu0 0.0
        %1225 = vmatprep.subr.mxu0 0.0
        %1226 = vmatpush1.xpose.msra.mxu0 0.0
        %1227 = vmatprep.subr.mxu0 0.0
        %1228 = vmatpush1.xpose.msra.mxu0 0.0
        %1229 = vmatprep.subr.mxu0 0.0
        %1230 = vmatpush1.xpose.msra.mxu0 0.0
        %1231 = vmatprep.subr.mxu0 0.0
        %1232 = vmatpush1.xpose.msra.mxu0 0.0
        %1233 = vmatprep.subr.mxu0 0.0
        %1234 = vmatpush1.xpose.msra.mxu0 0.0
        %1235 = vmatprep.subr.mxu0 0.0
        %1236 = vmatpush1.xpose.msra.mxu0 0.0
        %1237 = vmatprep.subr.mxu0 0.0
        %1238 = vmatpush1.xpose.msra.mxu0 0.0
        %1239 = vmatprep.subr.mxu0 0.0
        %1240 = vmatpush1.xpose.msra.mxu0 0.0
        %1241 = vmatprep.subr.mxu0 0.0
        %1242 = vmatpush1.xpose.msra.mxu0 0.0
        %1243 = vmatprep.subr.mxu0 0.0
        %1244 = vmatpush1.xpose.msra.mxu0 0.0
        %1245 = vmatprep.subr.mxu0 0.0
        %1246 = vmatpush1.xpose.msra.mxu0 0.0
        %1247 = vmatprep.subr.mxu0 0.0
        %1248 = vmatpush1.xpose.msra.mxu0 0.0
        %1249 = vmatprep.subr.mxu0 0.0
        %1250 = vmatpush1.xpose.msra.mxu0 0.0
        %1251 = vmatprep.mubr.f32.mxu0 0.0
        %1252 = vmatmul.mubr.f32.gmra.mrb[0].mxu0 %v456
        %v1253 = vpop.f32.mrb[0].mxu0
        %v1254 = vadd.f32 %v1185, %v1253
        %v1255 = vpop.f32.mrb[0].mxu0
        %1256 = vdwg.mxu0
        %1257 = vmax.xlane.f32.xlu0 %v1254
        %v1258 = vpop.xlane.xlu0 %1257
        %v1259 = vsub.f32 %v1254, %v1258
        %v1260 = vmul.f32 %v1259, 1.442695
        %v1261 = vpow.pop %v1260
        %1262 = vadd.xlane.f32.xlu0 %v1261
        %v1263 = vpop.xlane.xlu0 %1262
        %v1264 = vrcp.pop %v1263
        %v1265 = vmul.f32 %v1261, %v1264
        %v1266 = vsub.f32 %v1265, %v457
        %v1267 = vmul.f32 %v1266, 0.125
        %1268 = vxpose.xlu0.b32.start [1/16] %v1267, 128
        %1269 = vxpose.xlu0.b32.cont [2/16] 0.0, 128
        %1270 = vxpose.xlu0.b32.cont [3/16] 0.0, 128
        %1271 = vxpose.xlu0.b32.cont [4/16] 0.0, 128
        %1272 = vxpose.xlu0.b32.cont [5/16] 0.0, 128
        %1273 = vxpose.xlu0.b32.cont [6/16] 0.0, 128
        %1274 = vxpose.xlu0.b32.cont [7/16] 0.0, 128
        %1275 = vxpose.xlu0.b32.cont [8/16] 0.0, 128
        %1276 = vxpose.xlu0.b32.cont [9/16] 0.0, 128
        %1277 = vxpose.xlu0.b32.cont [10/16] 0.0, 128
        %1278 = vxpose.xlu0.b32.cont [11/16] 0.0, 128
        %1279 = vxpose.xlu0.b32.cont [12/16] 0.0, 128
        %1280 = vxpose.xlu0.b32.cont [13/16] 0.0, 128
        %1281 = vxpose.xlu0.b32.cont [14/16] 0.0, 128
        %1282 = vxpose.xlu0.b32.cont [15/16] 0.0, 128
        %1283 = vxpose.xlu0.b32.end [16/16] 0.0, 128
        %v1284 = vpop.trf.xlu0
        %v1285 = vpop.trf.xlu0
        %v1286 = vpop.trf.xlu0
        %v1287 = vpop.trf.xlu0
        %v1288 = vpop.trf.xlu0
        %v1289 = vpop.trf.xlu0
        %v1290 = vpop.trf.xlu0
        %v1291 = vpop.trf.xlu0
        %v1292 = vpop.trf.xlu0
        %v1293 = vpop.trf.xlu0
        %v1294 = vpop.trf.xlu0
        %v1295 = vpop.trf.xlu0
        %v1296 = vpop.trf.xlu0
        %v1297 = vpop.trf.xlu0
        %v1298 = vpop.trf.xlu0
        %v1299 = vpop.trf.xlu0
        %v1301 = vsel %vm594, %v1284, 0
        %v1304 = vsel %vm594, %v1285, 0
        %v1307 = vsel %vm594, %v1286, 0
        %v1310 = vsel %vm594, %v1287, 0
        %v1313 = vsel %vm594, %v1288, 0
        %v1316 = vsel %vm594, %v1289, 0
        %v1319 = vsel %vm594, %v1290, 0
        %v1322 = vsel %vm594, %v1291, 0
        %v1325 = vsel %vm594, %v1292, 0
        %v1328 = vsel %vm594, %v1293, 0
        %v1331 = vsel %vm594, %v1294, 0
        %v1334 = vsel %vm594, %v1295, 0
        %v1337 = vsel %vm594, %v1296, 0
        %v1340 = vsel %vm594, %v1297, 0
        %v1343 = vsel %vm594, %v1298, 0
        %v1346 = vsel %vm594, %v1299, 0
        %1348 = vmatprep.subr.mxu0 0.0
        %1349 = vmatpush1.msra.mxu0 %v456
        %1350 = vmatprep.subr.mxu0 0.0
        %1351 = vmatpush1.msra.mxu0 0.0
        %1352 = vmatprep.subr.mxu0 0.0
        %1353 = vmatpush1.msra.mxu0 0.0
        %1354 = vmatprep.subr.mxu0 0.0
        %1355 = vmatpush1.msra.mxu0 0.0
        %1356 = vmatprep.subr.mxu0 0.0
        %1357 = vmatpush1.msra.mxu0 0.0
        %1358 = vmatprep.subr.mxu0 0.0
        %1359 = vmatpush1.msra.mxu0 0.0
        %1360 = vmatprep.subr.mxu0 0.0
        %1361 = vmatpush1.msra.mxu0 0.0
        %1362 = vmatprep.subr.mxu0 0.0
        %1363 = vmatpush1.msra.mxu0 0.0
        %1364 = vmatprep.subr.mxu0 0.0
        %1365 = vmatpush1.msra.mxu0 0.0
        %1366 = vmatprep.subr.mxu0 0.0
        %1367 = vmatpush1.msra.mxu0 0.0
        %1368 = vmatprep.subr.mxu0 0.0
        %1369 = vmatpush1.msra.mxu0 0.0
        %1370 = vmatprep.subr.mxu0 0.0
        %1371 = vmatpush1.msra.mxu0 0.0
        %1372 = vmatprep.subr.mxu0 0.0
        %1373 = vmatpush1.msra.mxu0 0.0
        %1374 = vmatprep.subr.mxu0 0.0
        %1375 = vmatpush1.msra.mxu0 0.0
        %1376 = vmatprep.subr.mxu0 0.0
        %1377 = vmatpush1.msra.mxu0 0.0
        %1378 = vmatprep.subr.mxu0 0.0
        %1379 = vmatpush1.msra.mxu0 0.0
        %1380 = vmatprep.subr.mxu0 0.0
        %1381 = vmatpush1.msra.mxu0 0.0
        %1382 = vmatprep.subr.mxu0 0.0
        %1383 = vmatpush1.msra.mxu0 0.0
        %1384 = vmatprep.subr.mxu0 0.0
        %1385 = vmatpush1.msra.mxu0 0.0
        %1386 = vmatprep.subr.mxu0 0.0
        %1387 = vmatpush1.msra.mxu0 0.0
        %1388 = vmatprep.subr.mxu0 0.0
        %1389 = vmatpush1.msra.mxu0 0.0
        %1390 = vmatprep.subr.mxu0 0.0
        %1391 = vmatpush1.msra.mxu0 0.0
        %1392 = vmatprep.subr.mxu0 0.0
        %1393 = vmatpush1.msra.mxu0 0.0
        %1394 = vmatprep.subr.mxu0 0.0
        %1395 = vmatpush1.msra.mxu0 0.0
        %1396 = vmatprep.subr.mxu0 0.0
        %1397 = vmatpush1.msra.mxu0 0.0
        %1398 = vmatprep.subr.mxu0 0.0
        %1399 = vmatpush1.msra.mxu0 0.0
        %1400 = vmatprep.subr.mxu0 0.0
        %1401 = vmatpush1.msra.mxu0 0.0
        %1402 = vmatprep.subr.mxu0 0.0
        %1403 = vmatpush1.msra.mxu0 0.0
        %1404 = vmatprep.subr.mxu0 0.0
        %1405 = vmatpush1.msra.mxu0 0.0
        %1406 = vmatprep.subr.mxu0 0.0
        %1407 = vmatpush1.msra.mxu0 0.0
        %1408 = vmatprep.subr.mxu0 0.0
        %1409 = vmatpush1.msra.mxu0 0.0
        %1410 = vmatprep.subr.mxu0 0.0
        %1411 = vmatpush1.msra.mxu0 0.0
        %1412 = vmatprep.mubr.f32.mxu0 0.0
        %1413 = vmatmul.mubr.f32.gmra.mrb[0].mxu0 %v1301
        %v1414 = vpop.f32.mrb[0].mxu0
        %v1415 = vadd.f32 0.0, %v1414
        %v1416 = vpop.f32.mrb[0].mxu0
        %1417 = vmatprep.mubr.f32.mxu0 0.0
        %1418 = vmatmul.mubr.f32.gmra.mrb[0].mxu0 %v1304
        %v1419 = vpop.f32.mrb[0].mxu0
        %v1420 = vadd.f32 0.0, %v1419
        %v1421 = vpop.f32.mrb[0].mxu0
        %1422 = vmatprep.mubr.f32.mxu0 0.0
        %1423 = vmatmul.mubr.f32.gmra.mrb[0].mxu0 %v1307
        %v1424 = vpop.f32.mrb[0].mxu0
        %v1425 = vadd.f32 0.0, %v1424
        %v1426 = vpop.f32.mrb[0].mxu0
        %1427 = vmatprep.mubr.f32.mxu0 0.0
        %1428 = vmatmul.mubr.f32.gmra.mrb[0].mxu0 %v1310
        %v1429 = vpop.f32.mrb[0].mxu0
        %v1430 = vadd.f32 0.0, %v1429
        %v1431 = vpop.f32.mrb[0].mxu0
        %1432 = vmatprep.mubr.f32.mxu0 0.0
        %1433 = vmatmul.mubr.f32.gmra.mrb[0].mxu0 %v1313
        %v1434 = vpop.f32.mrb[0].mxu0
        %v1435 = vadd.f32 0.0, %v1434
        %v1436 = vpop.f32.mrb[0].mxu0
        %1437 = vmatprep.mubr.f32.mxu0 0.0
        %1438 = vmatmul.mubr.f32.gmra.mrb[0].mxu0 %v1316
        %v1439 = vpop.f32.mrb[0].mxu0
        %v1440 = vadd.f32 0.0, %v1439
        %v1441 = vpop.f32.mrb[0].mxu0
        %1442 = vmatprep.mubr.f32.mxu0 0.0
        %1443 = vmatmul.mubr.f32.gmra.mrb[0].mxu0 %v1319
        %v1444 = vpop.f32.mrb[0].mxu0
        %v1445 = vadd.f32 0.0, %v1444
        %v1446 = vpop.f32.mrb[0].mxu0
        %1447 = vmatprep.mubr.f32.mxu0 0.0
        %1448 = vmatmul.mubr.f32.gmra.mrb[0].mxu0 %v1322
        %v1449 = vpop.f32.mrb[0].mxu0
        %v1450 = vadd.f32 0.0, %v1449
        %v1451 = vpop.f32.mrb[0].mxu0
        %1452 = vmatprep.mubr.f32.mxu0 0.0
        %1453 = vmatmul.mubr.f32.gmra.mrb[0].mxu0 %v1325
        %v1454 = vpop.f32.mrb[0].mxu0
        %v1455 = vadd.f32 0.0, %v1454
        %v1456 = vpop.f32.mrb[0].mxu0
        %1457 = vmatprep.mubr.f32.mxu0 0.0
        %1458 = vmatmul.mubr.f32.gmra.mrb[0].mxu0 %v1328
        %v1459 = vpop.f32.mrb[0].mxu0
        %v1460 = vadd.f32 0.0, %v1459
        %v1461 = vpop.f32.mrb[0].mxu0
        %1462 = vmatprep.mubr.f32.mxu0 0.0
        %1463 = vmatmul.mubr.f32.gmra.mrb[0].mxu0 %v1331
        %v1464 = vpop.f32.mrb[0].mxu0
        %v1465 = vadd.f32 0.0, %v1464
        %v1466 = vpop.f32.mrb[0].mxu0
        %1467 = vmatprep.mubr.f32.mxu0 0.0
        %1468 = vmatmul.mubr.f32.gmra.mrb[0].mxu0 %v1334
        %v1469 = vpop.f32.mrb[0].mxu0
        %v1470 = vadd.f32 0.0, %v1469
        %v1471 = vpop.f32.mrb[0].mxu0
        %1472 = vmatprep.mubr.f32.mxu0 0.0
        %1473 = vmatmul.mubr.f32.gmra.mrb[0].mxu0 %v1337
        %v1474 = vpop.f32.mrb[0].mxu0
        %v1475 = vadd.f32 0.0, %v1474
        %v1476 = vpop.f32.mrb[0].mxu0
        %1477 = vmatprep.mubr.f32.mxu0 0.0
        %1478 = vmatmul.mubr.f32.gmra.mrb[0].mxu0 %v1340
        %v1479 = vpop.f32.mrb[0].mxu0
        %v1480 = vadd.f32 0.0, %v1479
        %v1481 = vpop.f32.mrb[0].mxu0
        %1482 = vmatprep.mubr.f32.mxu0 0.0
        %1483 = vmatmul.mubr.f32.gmra.mrb[0].mxu0 %v1343
        %v1484 = vpop.f32.mrb[0].mxu0
        %v1485 = vadd.f32 0.0, %v1484
        %v1486 = vpop.f32.mrb[0].mxu0
        %1487 = vmatprep.mubr.f32.mxu0 0.0
        %1488 = vmatmul.mubr.f32.gmra.mrb[0].mxu0 %v1346
        %v1489 = vpop.f32.mrb[0].mxu0
        %v1490 = vadd.f32 0.0, %v1489
        %v1491 = vpop.f32.mrb[0].mxu0
        %1492 = vdwg.mxu0
        %v1493 = vrot.slane %v1267, 4
        %v1494 = vadd.f32 %v1267, %v1493
        %v1495 = vrot.slane %v1494, 2
        %v1496 = vadd.f32 %v1494, %v1495
        %v1497 = vrot.slane %v1496, 1
        %v1498 = vadd.f32 %v1496, %v1497
        %v1499 = vmul.f32 %v794, %v1415
        %v1500 = vmul.f32 %v794, %v1420
        %v1501 = vmul.f32 %v794, %v1425
        %v1502 = vmul.f32 %v794, %v1430
        %v1503 = vmul.f32 %v794, %v1435
        %v1504 = vmul.f32 %v794, %v1440
        %v1505 = vmul.f32 %v794, %v1445
        %v1506 = vmul.f32 %v794, %v1450
        %v1507 = vmul.f32 %v794, %v1455
        %v1508 = vmul.f32 %v794, %v1460
        %v1509 = vmul.f32 %v794, %v1465
        %v1510 = vmul.f32 %v794, %v1470
        %v1511 = vmul.f32 %v794, %v1475
        %v1512 = vmul.f32 %v794, %v1480
        %v1513 = vmul.f32 %v794, %v1485
        %v1514 = vmul.f32 %v794, %v1490
        %v1515 = vsub.f32 %v1163, %v1499
        %v1516 = vsub.f32 %v1164, %v1500
        %v1517 = vsub.f32 %v1165, %v1501
        %v1518 = vsub.f32 %v1166, %v1502
        %v1519 = vsub.f32 %v1167, %v1503
        %v1520 = vsub.f32 %v1168, %v1504
        %v1521 = vsub.f32 %v1169, %v1505
        %v1522 = vsub.f32 %v1170, %v1506
        %v1523 = vsub.f32 %v1171, %v1507
        %v1524 = vsub.f32 %v1172, %v1508
        %v1525 = vsub.f32 %v1173, %v1509
        %v1526 = vsub.f32 %v1174, %v1510
        %v1527 = vsub.f32 %v1175, %v1511
        %v1528 = vsub.f32 %v1176, %v1512
        %v1529 = vsub.f32 %v1177, %v1513
        %v1530 = vsub.f32 %v1178, %v1514
        %v1531 = vmul.f32 %v794, %v1498
        %v1532 = vsub.f32 %v1180, %v1531
        %v1534 = vlaneseq
        %v1535 = vshrl.u32 %v1534, 7
        %v1536 = vsub.s32 0, %v1535
        %v1537 = vrot.slane %v1532, %v1536
        %1539 = vmatprep.subr.mxu0 0.0
        %1540 = vmatpush1.xpose.msra.mxu0 %v1515
        %1541 = vmatprep.subr.mxu0 0.0
        %1542 = vmatpush1.xpose.msra.mxu0 %v1516
        %1543 = vmatprep.subr.mxu0 0.0
        %1544 = vmatpush1.xpose.msra.mxu0 %v1517
        %1545 = vmatprep.subr.mxu0 0.0
        %1546 = vmatpush1.xpose.msra.mxu0 %v1518
        %1547 = vmatprep.subr.mxu0 0.0
        %1548 = vmatpush1.xpose.msra.mxu0 %v1519
        %1549 = vmatprep.subr.mxu0 0.0
        %1550 = vmatpush1.xpose.msra.mxu0 %v1520
        %1551 = vmatprep.subr.mxu0 0.0
        %1552 = vmatpush1.xpose.msra.mxu0 %v1521
        %1553 = vmatprep.subr.mxu0 0.0
        %1554 = vmatpush1.xpose.msra.mxu0 %v1522
        %1555 = vmatprep.subr.mxu0 0.0
        %1556 = vmatpush1.xpose.msra.mxu0 %v1523
        %1557 = vmatprep.subr.mxu0 0.0
        %1558 = vmatpush1.xpose.msra.mxu0 %v1524
        %1559 = vmatprep.subr.mxu0 0.0
        %1560 = vmatpush1.xpose.msra.mxu0 %v1525
        %1561 = vmatprep.subr.mxu0 0.0
        %1562 = vmatpush1.xpose.msra.mxu0 %v1526
        %1563 = vmatprep.subr.mxu0 0.0
        %1564 = vmatpush1.xpose.msra.mxu0 %v1527
        %1565 = vmatprep.subr.mxu0 0.0
        %1566 = vmatpush1.xpose.msra.mxu0 %v1528
        %1567 = vmatprep.subr.mxu0 0.0
        %1568 = vmatpush1.xpose.msra.mxu0 %v1529
        %1569 = vmatprep.subr.mxu0 0.0
        %1570 = vmatpush1.xpose.msra.mxu0 %v1530
        %1571 = vmatprep.subr.mxu0 0.0
        %1572 = vmatpush1.xpose.msra.mxu0 0.0
        %1573 = vmatprep.subr.mxu0 0.0
        %1574 = vmatpush1.xpose.msra.mxu0 0.0
        %1575 = vmatprep.subr.mxu0 0.0
        %1576 = vmatpush1.xpose.msra.mxu0 0.0
        %1577 = vmatprep.subr.mxu0 0.0
        %1578 = vmatpush1.xpose.msra.mxu0 0.0
        %1579 = vmatprep.subr.mxu0 0.0
        %1580 = vmatpush1.xpose.msra.mxu0 0.0
        %1581 = vmatprep.subr.mxu0 0.0
        %1582 = vmatpush1.xpose.msra.mxu0 0.0
        %1583 = vmatprep.subr.mxu0 0.0
        %1584 = vmatpush1.xpose.msra.mxu0 0.0
        %1585 = vmatprep.subr.mxu0 0.0
        %1586 = vmatpush1.xpose.msra.mxu0 0.0
        %1587 = vmatprep.subr.mxu0 0.0
        %1588 = vmatpush1.xpose.msra.mxu0 0.0
        %1589 = vmatprep.subr.mxu0 0.0
        %1590 = vmatpush1.xpose.msra.mxu0 0.0
        %1591 = vmatprep.subr.mxu0 0.0
        %1592 = vmatpush1.xpose.msra.mxu0 0.0
        %1593 = vmatprep.subr.mxu0 0.0
        %1594 = vmatpush1.xpose.msra.mxu0 0.0
        %1595 = vmatprep.subr.mxu0 0.0
        %1596 = vmatpush1.xpose.msra.mxu0 0.0
        %1597 = vmatprep.subr.mxu0 0.0
        %1598 = vmatpush1.xpose.msra.mxu0 0.0
        %1599 = vmatprep.subr.mxu0 0.0
        %1600 = vmatpush1.xpose.msra.mxu0 0.0
        %1601 = vmatprep.subr.mxu0 0.0
        %1602 = vmatpush1.xpose.msra.mxu0 0.0
        %1603 = vmatprep.mubr.f32.mxu0 0.0
        %1604 = vmatmul.mubr.f32.gmra.mrb[0].mxu0 %v456
        %v1605 = vpop.f32.mrb[0].mxu0
        %v1606 = vadd.f32 %v1537, %v1605
        %v1607 = vpop.f32.mrb[0].mxu0
        %1608 = vdwg.mxu0
        %1609 = vmax.xlane.f32.xlu0 %v1606
        %v1610 = vpop.xlane.xlu0 %1609
        %v1611 = vsub.f32 %v1606, %v1610
        %v1612 = vmul.f32 %v1611, 1.442695
        %v1613 = vpow.pop %v1612
        %1614 = vadd.xlane.f32.xlu0 %v1613
        %v1615 = vpop.xlane.xlu0 %1614
        %v1616 = vrcp.pop %v1615
        %v1617 = vmul.f32 %v1613, %v1616
        %v1618 = vsub.f32 %v1617, %v457
        %v1619 = vmul.f32 %v1618, 0.125
        %1620 = vxpose.xlu0.b32.start [1/16] %v1619, 128
        %1621 = vxpose.xlu0.b32.cont [2/16] 0.0, 128
        %1622 = vxpose.xlu0.b32.cont [3/16] 0.0, 128
        %1623 = vxpose.xlu0.b32.cont [4/16] 0.0, 128
        %1624 = vxpose.xlu0.b32.cont [5/16] 0.0, 128
        %1625 = vxpose.xlu0.b32.cont [6/16] 0.0, 128
        %1626 = vxpose.xlu0.b32.cont [7/16] 0.0, 128
        %1627 = vxpose.xlu0.b32.cont [8/16] 0.0, 128
        %1628 = vxpose.xlu0.b32.cont [9/16] 0.0, 128
        %1629 = vxpose.xlu0.b32.cont [10/16] 0.0, 128
        %1630 = vxpose.xlu0.b32.cont [11/16] 0.0, 128
        %1631 = vxpose.xlu0.b32.cont [12/16] 0.0, 128
        %1632 = vxpose.xlu0.b32.cont [13/16] 0.0, 128
        %1633 = vxpose.xlu0.b32.cont [14/16] 0.0, 128
        %1634 = vxpose.xlu0.b32.cont [15/16] 0.0, 128
        %1635 = vxpose.xlu0.b32.end [16/16] 0.0, 128
        %v1636 = vpop.trf.xlu0
        %v1637 = vpop.trf.xlu0
        %v1638 = vpop.trf.xlu0
        %v1639 = vpop.trf.xlu0
        %v1640 = vpop.trf.xlu0
        %v1641 = vpop.trf.xlu0
        %v1642 = vpop.trf.xlu0
        %v1643 = vpop.trf.xlu0
        %v1644 = vpop.trf.xlu0
        %v1645 = vpop.trf.xlu0
        %v1646 = vpop.trf.xlu0
        %v1647 = vpop.trf.xlu0
        %v1648 = vpop.trf.xlu0
        %v1649 = vpop.trf.xlu0
        %v1650 = vpop.trf.xlu0
        %v1651 = vpop.trf.xlu0
        %v1653 = vsel %vm594, %v1636, 0
        %v1656 = vsel %vm594, %v1637, 0
        %v1659 = vsel %vm594, %v1638, 0
        %v1662 = vsel %vm594, %v1639, 0
        %v1665 = vsel %vm594, %v1640, 0
        %v1668 = vsel %vm594, %v1641, 0
        %v1671 = vsel %vm594, %v1642, 0
        %v1674 = vsel %vm594, %v1643, 0
        %v1677 = vsel %vm594, %v1644, 0
        %v1680 = vsel %vm594, %v1645, 0
        %v1683 = vsel %vm594, %v1646, 0
        %v1686 = vsel %vm594, %v1647, 0
        %v1689 = vsel %vm594, %v1648, 0
        %v1692 = vsel %vm594, %v1649, 0
        %v1695 = vsel %vm594, %v1650, 0
        %v1698 = vsel %vm594, %v1651, 0
        %1700 = vmatprep.subr.mxu0 0.0
        %1701 = vmatpush1.msra.mxu0 %v456
        %1702 = vmatprep.subr.mxu0 0.0
        %1703 = vmatpush1.msra.mxu0 0.0
        %1704 = vmatprep.subr.mxu0 0.0
        %1705 = vmatpush1.msra.mxu0 0.0
        %1706 = vmatprep.subr.mxu0 0.0
        %1707 = vmatpush1.msra.mxu0 0.0
        %1708 = vmatprep.subr.mxu0 0.0
        %1709 = vmatpush1.msra.mxu0 0.0
        %1710 = vmatprep.subr.mxu0 0.0
        %1711 = vmatpush1.msra.mxu0 0.0
        %1712 = vmatprep.subr.mxu0 0.0
        %1713 = vmatpush1.msra.mxu0 0.0
        %1714 = vmatprep.subr.mxu0 0.0
        %1715 = vmatpush1.msra.mxu0 0.0
        %1716 = vmatprep.subr.mxu0 0.0
        %1717 = vmatpush1.msra.mxu0 0.0
        %1718 = vmatprep.subr.mxu0 0.0
        %1719 = vmatpush1.msra.mxu0 0.0
        %1720 = vmatprep.subr.mxu0 0.0
        %1721 = vmatpush1.msra.mxu0 0.0
        %1722 = vmatprep.subr.mxu0 0.0
        %1723 = vmatpush1.msra.mxu0 0.0
        %1724 = vmatprep.subr.mxu0 0.0
        %1725 = vmatpush1.msra.mxu0 0.0
        %1726 = vmatprep.subr.mxu0 0.0
        %1727 = vmatpush1.msra.mxu0 0.0
        %1728 = vmatprep.subr.mxu0 0.0
        %1729 = vmatpush1.msra.mxu0 0.0
        %1730 = vmatprep.subr.mxu0 0.0
        %1731 = vmatpush1.msra.mxu0 0.0
        %1732 = vmatprep.subr.mxu0 0.0
        %1733 = vmatpush1.msra.mxu0 0.0
        %1734 = vmatprep.subr.mxu0 0.0
        %1735 = vmatpush1.msra.mxu0 0.0
        %1736 = vmatprep.subr.mxu0 0.0
        %1737 = vmatpush1.msra.mxu0 0.0
        %1738 = vmatprep.subr.mxu0 0.0
        %1739 = vmatpush1.msra.mxu0 0.0
        %1740 = vmatprep.subr.mxu0 0.0
        %1741 = vmatpush1.msra.mxu0 0.0
        %1742 = vmatprep.subr.mxu0 0.0
        %1743 = vmatpush1.msra.mxu0 0.0
        %1744 = vmatprep.subr.mxu0 0.0
        %1745 = vmatpush1.msra.mxu0 0.0
        %1746 = vmatprep.subr.mxu0 0.0
        %1747 = vmatpush1.msra.mxu0 0.0
        %1748 = vmatprep.subr.mxu0 0.0
        %1749 = vmatpush1.msra.mxu0 0.0
        %1750 = vmatprep.subr.mxu0 0.0
        %1751 = vmatpush1.msra.mxu0 0.0
        %1752 = vmatprep.subr.mxu0 0.0
        %1753 = vmatpush1.msra.mxu0 0.0
        %1754 = vmatprep.subr.mxu0 0.0
        %1755 = vmatpush1.msra.mxu0 0.0
        %1756 = vmatprep.subr.mxu0 0.0
        %1757 = vmatpush1.msra.mxu0 0.0
        %1758 = vmatprep.subr.mxu0 0.0
        %1759 = vmatpush1.msra.mxu0 0.0
        %1760 = vmatprep.subr.mxu0 0.0
        %1761 = vmatpush1.msra.mxu0 0.0
        %1762 = vmatprep.subr.mxu0 0.0
        %1763 = vmatpush1.msra.mxu0 0.0
        %1764 = vmatprep.mubr.f32.mxu0 0.0
        %1765 = vmatmul.mubr.f32.gmra.mrb[0].mxu0 %v1653
        %v1766 = vpop.f32.mrb[0].mxu0
        %v1767 = vadd.f32 0.0, %v1766
        %v1768 = vpop.f32.mrb[0].mxu0
        %1769 = vmatprep.mubr.f32.mxu0 0.0
        %1770 = vmatmul.mubr.f32.gmra.mrb[0].mxu0 %v1656
        %v1771 = vpop.f32.mrb[0].mxu0
        %v1772 = vadd.f32 0.0, %v1771
        %v1773 = vpop.f32.mrb[0].mxu0
        %1774 = vmatprep.mubr.f32.mxu0 0.0
        %1775 = vmatmul.mubr.f32.gmra.mrb[0].mxu0 %v1659
        %v1776 = vpop.f32.mrb[0].mxu0
        %v1777 = vadd.f32 0.0, %v1776
        %v1778 = vpop.f32.mrb[0].mxu0
        %1779 = vmatprep.mubr.f32.mxu0 0.0
        %1780 = vmatmul.mubr.f32.gmra.mrb[0].mxu0 %v1662
        %v1781 = vpop.f32.mrb[0].mxu0
        %v1782 = vadd.f32 0.0, %v1781
        %v1783 = vpop.f32.mrb[0].mxu0
        %1784 = vmatprep.mubr.f32.mxu0 0.0
        %1785 = vmatmul.mubr.f32.gmra.mrb[0].mxu0 %v1665
        %v1786 = vpop.f32.mrb[0].mxu0
        %v1787 = vadd.f32 0.0, %v1786
        %v1788 = vpop.f32.mrb[0].mxu0
        %1789 = vmatprep.mubr.f32.mxu0 0.0
        %1790 = vmatmul.mubr.f32.gmra.mrb[0].mxu0 %v1668
        %v1791 = vpop.f32.mrb[0].mxu0
        %v1792 = vadd.f32 0.0, %v1791
        %v1793 = vpop.f32.mrb[0].mxu0
        %1794 = vmatprep.mubr.f32.mxu0 0.0
        %1795 = vmatmul.mubr.f32.gmra.mrb[0].mxu0 %v1671
        %v1796 = vpop.f32.mrb[0].mxu0
        %v1797 = vadd.f32 0.0, %v1796
        %v1798 = vpop.f32.mrb[0].mxu0
        %1799 = vmatprep.mubr.f32.mxu0 0.0
        %1800 = vmatmul.mubr.f32.gmra.mrb[0].mxu0 %v1674
        %v1801 = vpop.f32.mrb[0].mxu0
        %v1802 = vadd.f32 0.0, %v1801
        %v1803 = vpop.f32.mrb[0].mxu0
        %1804 = vmatprep.mubr.f32.mxu0 0.0
        %1805 = vmatmul.mubr.f32.gmra.mrb[0].mxu0 %v1677
        %v1806 = vpop.f32.mrb[0].mxu0
        %v1807 = vadd.f32 0.0, %v1806
        %v1808 = vpop.f32.mrb[0].mxu0
        %1809 = vmatprep.mubr.f32.mxu0 0.0
        %1810 = vmatmul.mubr.f32.gmra.mrb[0].mxu0 %v1680
        %v1811 = vpop.f32.mrb[0].mxu0
        %v1812 = vadd.f32 0.0, %v1811
        %v1813 = vpop.f32.mrb[0].mxu0
        %1814 = vmatprep.mubr.f32.mxu0 0.0
        %1815 = vmatmul.mubr.f32.gmra.mrb[0].mxu0 %v1683
        %v1816 = vpop.f32.mrb[0].mxu0
        %v1817 = vadd.f32 0.0, %v1816
        %v1818 = vpop.f32.mrb[0].mxu0
        %1819 = vmatprep.mubr.f32.mxu0 0.0
        %1820 = vmatmul.mubr.f32.gmra.mrb[0].mxu0 %v1686
        %v1821 = vpop.f32.mrb[0].mxu0
        %v1822 = vadd.f32 0.0, %v1821
        %v1823 = vpop.f32.mrb[0].mxu0
        %1824 = vmatprep.mubr.f32.mxu0 0.0
        %1825 = vmatmul.mubr.f32.gmra.mrb[0].mxu0 %v1689
        %v1826 = vpop.f32.mrb[0].mxu0
        %v1827 = vadd.f32 0.0, %v1826
        %v1828 = vpop.f32.mrb[0].mxu0
        %1829 = vmatprep.mubr.f32.mxu0 0.0
        %1830 = vmatmul.mubr.f32.gmra.mrb[0].mxu0 %v1692
        %v1831 = vpop.f32.mrb[0].mxu0
        %v1832 = vadd.f32 0.0, %v1831
        %v1833 = vpop.f32.mrb[0].mxu0
        %1834 = vmatprep.mubr.f32.mxu0 0.0
        %1835 = vmatmul.mubr.f32.gmra.mrb[0].mxu0 %v1695
        %v1836 = vpop.f32.mrb[0].mxu0
        %v1837 = vadd.f32 0.0, %v1836
        %v1838 = vpop.f32.mrb[0].mxu0
        %1839 = vmatprep.mubr.f32.mxu0 0.0
        %1840 = vmatmul.mubr.f32.gmra.mrb[0].mxu0 %v1698
        %v1841 = vpop.f32.mrb[0].mxu0
        %v1842 = vadd.f32 0.0, %v1841
        %v1843 = vpop.f32.mrb[0].mxu0
        %1844 = vdwg.mxu0
        %v1845 = vrot.slane %v1619, 4
        %v1846 = vadd.f32 %v1619, %v1845
        %v1847 = vrot.slane %v1846, 2
        %v1848 = vadd.f32 %v1846, %v1847
        %v1849 = vrot.slane %v1848, 1
        %v1850 = vadd.f32 %v1848, %v1849
        %v1851 = vmul.f32 %v794, %v1767
        %v1852 = vmul.f32 %v794, %v1772
        %v1853 = vmul.f32 %v794, %v1777
        %v1854 = vmul.f32 %v794, %v1782
        %v1855 = vmul.f32 %v794, %v1787
        %v1856 = vmul.f32 %v794, %v1792
        %v1857 = vmul.f32 %v794, %v1797
        %v1858 = vmul.f32 %v794, %v1802
        %v1859 = vmul.f32 %v794, %v1807
        %v1860 = vmul.f32 %v794, %v1812
        %v1861 = vmul.f32 %v794, %v1817
        %v1862 = vmul.f32 %v794, %v1822
        %v1863 = vmul.f32 %v794, %v1827
        %v1864 = vmul.f32 %v794, %v1832
        %v1865 = vmul.f32 %v794, %v1837
        %v1866 = vmul.f32 %v794, %v1842
        %v1867 = vsub.f32 %v1515, %v1851
        %v1868 = vsub.f32 %v1516, %v1852
        %v1869 = vsub.f32 %v1517, %v1853
        %v1870 = vsub.f32 %v1518, %v1854
        %v1871 = vsub.f32 %v1519, %v1855
        %v1872 = vsub.f32 %v1520, %v1856
        %v1873 = vsub.f32 %v1521, %v1857
        %v1874 = vsub.f32 %v1522, %v1858
        %v1875 = vsub.f32 %v1523, %v1859
        %v1876 = vsub.f32 %v1524, %v1860
        %v1877 = vsub.f32 %v1525, %v1861
        %v1878 = vsub.f32 %v1526, %v1862
        %v1879 = vsub.f32 %v1527, %v1863
        %v1880 = vsub.f32 %v1528, %v1864
        %v1881 = vsub.f32 %v1529, %v1865
        %v1882 = vsub.f32 %v1530, %v1866
        %v1883 = vmul.f32 %v794, %v1850
        %v1884 = vsub.f32 %v1532, %v1883
        %v1886 = vlaneseq
        %v1887 = vshrl.u32 %v1886, 7
        %v1888 = vsub.s32 0, %v1887
        %v1889 = vrot.slane %v1884, %v1888
        %1891 = vmatprep.subr.mxu0 0.0
        %1892 = vmatpush1.xpose.msra.mxu0 %v1867
        %1893 = vmatprep.subr.mxu0 0.0
        %1894 = vmatpush1.xpose.msra.mxu0 %v1868
        %1895 = vmatprep.subr.mxu0 0.0
        %1896 = vmatpush1.xpose.msra.mxu0 %v1869
        %1897 = vmatprep.subr.mxu0 0.0
        %1898 = vmatpush1.xpose.msra.mxu0 %v1870
        %1899 = vmatprep.subr.mxu0 0.0
        %1900 = vmatpush1.xpose.msra.mxu0 %v1871
        %1901 = vmatprep.subr.mxu0 0.0
        %1902 = vmatpush1.xpose.msra.mxu0 %v1872
        %1903 = vmatprep.subr.mxu0 0.0
        %1904 = vmatpush1.xpose.msra.mxu0 %v1873
        %1905 = vmatprep.subr.mxu0 0.0
        %1906 = vmatpush1.xpose.msra.mxu0 %v1874
        %1907 = vmatprep.subr.mxu0 0.0
        %1908 = vmatpush1.xpose.msra.mxu0 %v1875
        %1909 = vmatprep.subr.mxu0 0.0
        %1910 = vmatpush1.xpose.msra.mxu0 %v1876
        %1911 = vmatprep.subr.mxu0 0.0
        %1912 = vmatpush1.xpose.msra.mxu0 %v1877
        %1913 = vmatprep.subr.mxu0 0.0
        %1914 = vmatpush1.xpose.msra.mxu0 %v1878
        %1915 = vmatprep.subr.mxu0 0.0
        %1916 = vmatpush1.xpose.msra.mxu0 %v1879
        %1917 = vmatprep.subr.mxu0 0.0
        %1918 = vmatpush1.xpose.msra.mxu0 %v1880
        %1919 = vmatprep.subr.mxu0 0.0
        %1920 = vmatpush1.xpose.msra.mxu0 %v1881
        %1921 = vmatprep.subr.mxu0 0.0
        %1922 = vmatpush1.xpose.msra.mxu0 %v1882
        %1923 = vmatprep.subr.mxu0 0.0
        %1924 = vmatpush1.xpose.msra.mxu0 0.0
        %1925 = vmatprep.subr.mxu0 0.0
        %1926 = vmatpush1.xpose.msra.mxu0 0.0
        %1927 = vmatprep.subr.mxu0 0.0
        %1928 = vmatpush1.xpose.msra.mxu0 0.0
        %1929 = vmatprep.subr.mxu0 0.0
        %1930 = vmatpush1.xpose.msra.mxu0 0.0
        %1931 = vmatprep.subr.mxu0 0.0
        %1932 = vmatpush1.xpose.msra.mxu0 0.0
        %1933 = vmatprep.subr.mxu0 0.0
        %1934 = vmatpush1.xpose.msra.mxu0 0.0
        %1935 = vmatprep.subr.mxu0 0.0
        %1936 = vmatpush1.xpose.msra.mxu0 0.0
        %1937 = vmatprep.subr.mxu0 0.0
        %1938 = vmatpush1.xpose.msra.mxu0 0.0
        %1939 = vmatprep.subr.mxu0 0.0
        %1940 = vmatpush1.xpose.msra.mxu0 0.0
        %1941 = vmatprep.subr.mxu0 0.0
        %1942 = vmatpush1.xpose.msra.mxu0 0.0
        %1943 = vmatprep.subr.mxu0 0.0
        %1944 = vmatpush1.xpose.msra.mxu0 0.0
        %1945 = vmatprep.subr.mxu0 0.0
        %1946 = vmatpush1.xpose.msra.mxu0 0.0
        %1947 = vmatprep.subr.mxu0 0.0
        %1948 = vmatpush1.xpose.msra.mxu0 0.0
        %1949 = vmatprep.subr.mxu0 0.0
        %1950 = vmatpush1.xpose.msra.mxu0 0.0
        %1951 = vmatprep.subr.mxu0 0.0
        %1952 = vmatpush1.xpose.msra.mxu0 0.0
        %1953 = vmatprep.subr.mxu0 0.0
        %1954 = vmatpush1.xpose.msra.mxu0 0.0
        %1955 = vmatprep.mubr.f32.mxu0 0.0
        %1956 = vmatmul.mubr.f32.gmra.mrb[0].mxu0 %v456
        %v1957 = vpop.f32.mrb[0].mxu0
        %v1958 = vadd.f32 %v1889, %v1957
        %v1959 = vpop.f32.mrb[0].mxu0
        %1960 = vdwg.mxu0
        %1961 = vmax.xlane.f32.xlu0 %v1958
        %v1962 = vpop.xlane.xlu0 %1961
        %v1963 = vsub.f32 %v1958, %v1962
        %v1964 = vmul.f32 %v1963, 1.442695
        %v1965 = vpow.pop %v1964
        %1966 = vadd.xlane.f32.xlu0 %v1965
        %v1967 = vpop.xlane.xlu0 %1966
        %v1968 = vrcp.pop %v1967
        %v1969 = vmul.f32 %v1965, %v1968
        %v1970 = vsub.f32 %v1969, %v457
        %v1971 = vmul.f32 %v1970, 0.125
        %1972 = vxpose.xlu0.b32.start [1/16] %v1971, 128
        %1973 = vxpose.xlu0.b32.cont [2/16] 0.0, 128
        %1974 = vxpose.xlu0.b32.cont [3/16] 0.0, 128
        %1975 = vxpose.xlu0.b32.cont [4/16] 0.0, 128
        %1976 = vxpose.xlu0.b32.cont [5/16] 0.0, 128
        %1977 = vxpose.xlu0.b32.cont [6/16] 0.0, 128
        %1978 = vxpose.xlu0.b32.cont [7/16] 0.0, 128
        %1979 = vxpose.xlu0.b32.cont [8/16] 0.0, 128
        %1980 = vxpose.xlu0.b32.cont [9/16] 0.0, 128
        %1981 = vxpose.xlu0.b32.cont [10/16] 0.0, 128
        %1982 = vxpose.xlu0.b32.cont [11/16] 0.0, 128
        %1983 = vxpose.xlu0.b32.cont [12/16] 0.0, 128
        %1984 = vxpose.xlu0.b32.cont [13/16] 0.0, 128
        %1985 = vxpose.xlu0.b32.cont [14/16] 0.0, 128
        %1986 = vxpose.xlu0.b32.cont [15/16] 0.0, 128
        %1987 = vxpose.xlu0.b32.end [16/16] 0.0, 128
        %v1988 = vpop.trf.xlu0
        %v1989 = vpop.trf.xlu0
        %v1990 = vpop.trf.xlu0
        %v1991 = vpop.trf.xlu0
        %v1992 = vpop.trf.xlu0
        %v1993 = vpop.trf.xlu0
        %v1994 = vpop.trf.xlu0
        %v1995 = vpop.trf.xlu0
        %v1996 = vpop.trf.xlu0
        %v1997 = vpop.trf.xlu0
        %v1998 = vpop.trf.xlu0
        %v1999 = vpop.trf.xlu0
        %v2000 = vpop.trf.xlu0
        %v2001 = vpop.trf.xlu0
        %v2002 = vpop.trf.xlu0
        %v2003 = vpop.trf.xlu0
        %v2005 = vsel %vm594, %v1988, 0
        %v2008 = vsel %vm594, %v1989, 0
        %v2011 = vsel %vm594, %v1990, 0
        %v2014 = vsel %vm594, %v1991, 0
        %v2017 = vsel %vm594, %v1992, 0
        %v2020 = vsel %vm594, %v1993, 0
        %v2023 = vsel %vm594, %v1994, 0
        %v2026 = vsel %vm594, %v1995, 0
        %v2029 = vsel %vm594, %v1996, 0
        %v2032 = vsel %vm594, %v1997, 0
        %v2035 = vsel %vm594, %v1998, 0
        %v2038 = vsel %vm594, %v1999, 0
        %v2041 = vsel %vm594, %v2000, 0
        %v2044 = vsel %vm594, %v2001, 0
        %v2047 = vsel %vm594, %v2002, 0
        %v2050 = vsel %vm594, %v2003, 0
        %2052 = vmatprep.subr.mxu0 0.0
        %2053 = vmatpush1.msra.mxu0 %v456
        %2054 = vmatprep.subr.mxu0 0.0
        %2055 = vmatpush1.msra.mxu0 0.0
        %2056 = vmatprep.subr.mxu0 0.0
        %2057 = vmatpush1.msra.mxu0 0.0
        %2058 = vmatprep.subr.mxu0 0.0
        %2059 = vmatpush1.msra.mxu0 0.0
        %2060 = vmatprep.subr.mxu0 0.0
        %2061 = vmatpush1.msra.mxu0 0.0
        %2062 = vmatprep.subr.mxu0 0.0
        %2063 = vmatpush1.msra.mxu0 0.0
        %2064 = vmatprep.subr.mxu0 0.0
        %2065 = vmatpush1.msra.mxu0 0.0
        %2066 = vmatprep.subr.mxu0 0.0
        %2067 = vmatpush1.msra.mxu0 0.0
        %2068 = vmatprep.subr.mxu0 0.0
        %2069 = vmatpush1.msra.mxu0 0.0
        %2070 = vmatprep.subr.mxu0 0.0
        %2071 = vmatpush1.msra.mxu0 0.0
        %2072 = vmatprep.subr.mxu0 0.0
        %2073 = vmatpush1.msra.mxu0 0.0
        %2074 = vmatprep.subr.mxu0 0.0
        %2075 = vmatpush1.msra.mxu0 0.0
        %2076 = vmatprep.subr.mxu0 0.0
        %2077 = vmatpush1.msra.mxu0 0.0
        %2078 = vmatprep.subr.mxu0 0.0
        %2079 = vmatpush1.msra.mxu0 0.0
        %2080 = vmatprep.subr.mxu0 0.0
        %2081 = vmatpush1.msra.mxu0 0.0
        %2082 = vmatprep.subr.mxu0 0.0
        %2083 = vmatpush1.msra.mxu0 0.0
        %2084 = vmatprep.subr.mxu0 0.0
        %2085 = vmatpush1.msra.mxu0 0.0
        %2086 = vmatprep.subr.mxu0 0.0
        %2087 = vmatpush1.msra.mxu0 0.0
        %2088 = vmatprep.subr.mxu0 0.0
        %2089 = vmatpush1.msra.mxu0 0.0
        %2090 = vmatprep.subr.mxu0 0.0
        %2091 = vmatpush1.msra.mxu0 0.0
        %2092 = vmatprep.subr.mxu0 0.0
        %2093 = vmatpush1.msra.mxu0 0.0
        %2094 = vmatprep.subr.mxu0 0.0
        %2095 = vmatpush1.msra.mxu0 0.0
        %2096 = vmatprep.subr.mxu0 0.0
        %2097 = vmatpush1.msra.mxu0 0.0
        %2098 = vmatprep.subr.mxu0 0.0
        %2099 = vmatpush1.msra.mxu0 0.0
        %2100 = vmatprep.subr.mxu0 0.0
        %2101 = vmatpush1.msra.mxu0 0.0
        %2102 = vmatprep.subr.mxu0 0.0
        %2103 = vmatpush1.msra.mxu0 0.0
        %2104 = vmatprep.subr.mxu0 0.0
        %2105 = vmatpush1.msra.mxu0 0.0
        %2106 = vmatprep.subr.mxu0 0.0
        %2107 = vmatpush1.msra.mxu0 0.0
        %2108 = vmatprep.subr.mxu0 0.0
        %2109 = vmatpush1.msra.mxu0 0.0
        %2110 = vmatprep.subr.mxu0 0.0
        %2111 = vmatpush1.msra.mxu0 0.0
        %2112 = vmatprep.subr.mxu0 0.0
        %2113 = vmatpush1.msra.mxu0 0.0
        %2114 = vmatprep.subr.mxu0 0.0
        %2115 = vmatpush1.msra.mxu0 0.0
        %2116 = vmatprep.mubr.f32.mxu0 0.0
        %2117 = vmatmul.mubr.f32.gmra.mrb[0].mxu0 %v2005
        %v2118 = vpop.f32.mrb[0].mxu0
        %v2119 = vadd.f32 0.0, %v2118
        %v2120 = vpop.f32.mrb[0].mxu0
        %2121 = vmatprep.mubr.f32.mxu0 0.0
        %2122 = vmatmul.mubr.f32.gmra.mrb[0].mxu0 %v2008
        %v2123 = vpop.f32.mrb[0].mxu0
        %v2124 = vadd.f32 0.0, %v2123
        %v2125 = vpop.f32.mrb[0].mxu0
        %2126 = vmatprep.mubr.f32.mxu0 0.0
        %2127 = vmatmul.mubr.f32.gmra.mrb[0].mxu0 %v2011
        %v2128 = vpop.f32.mrb[0].mxu0
        %v2129 = vadd.f32 0.0, %v2128
        %v2130 = vpop.f32.mrb[0].mxu0
        %2131 = vmatprep.mubr.f32.mxu0 0.0
        %2132 = vmatmul.mubr.f32.gmra.mrb[0].mxu0 %v2014
        %v2133 = vpop.f32.mrb[0].mxu0
        %v2134 = vadd.f32 0.0, %v2133
        %v2135 = vpop.f32.mrb[0].mxu0
        %2136 = vmatprep.mubr.f32.mxu0 0.0
        %2137 = vmatmul.mubr.f32.gmra.mrb[0].mxu0 %v2017
        %v2138 = vpop.f32.mrb[0].mxu0
        %v2139 = vadd.f32 0.0, %v2138
        %v2140 = vpop.f32.mrb[0].mxu0
        %2141 = vmatprep.mubr.f32.mxu0 0.0
        %2142 = vmatmul.mubr.f32.gmra.mrb[0].mxu0 %v2020
        %v2143 = vpop.f32.mrb[0].mxu0
        %v2144 = vadd.f32 0.0, %v2143
        %v2145 = vpop.f32.mrb[0].mxu0
        %2146 = vmatprep.mubr.f32.mxu0 0.0
        %2147 = vmatmul.mubr.f32.gmra.mrb[0].mxu0 %v2023
        %v2148 = vpop.f32.mrb[0].mxu0
        %v2149 = vadd.f32 0.0, %v2148
        %v2150 = vpop.f32.mrb[0].mxu0
        %2151 = vmatprep.mubr.f32.mxu0 0.0
        %2152 = vmatmul.mubr.f32.gmra.mrb[0].mxu0 %v2026
        %v2153 = vpop.f32.mrb[0].mxu0
        %v2154 = vadd.f32 0.0, %v2153
        %v2155 = vpop.f32.mrb[0].mxu0
        %2156 = vmatprep.mubr.f32.mxu0 0.0
        %2157 = vmatmul.mubr.f32.gmra.mrb[0].mxu0 %v2029
        %v2158 = vpop.f32.mrb[0].mxu0
        %v2159 = vadd.f32 0.0, %v2158
        %v2160 = vpop.f32.mrb[0].mxu0
        %2161 = vmatprep.mubr.f32.mxu0 0.0
        %2162 = vmatmul.mubr.f32.gmra.mrb[0].mxu0 %v2032
        %v2163 = vpop.f32.mrb[0].mxu0
        %v2164 = vadd.f32 0.0, %v2163
        %v2165 = vpop.f32.mrb[0].mxu0
        %2166 = vmatprep.mubr.f32.mxu0 0.0
        %2167 = vmatmul.mubr.f32.gmra.mrb[0].mxu0 %v2035
        %v2168 = vpop.f32.mrb[0].mxu0
        %v2169 = vadd.f32 0.0, %v2168
        %v2170 = vpop.f32.mrb[0].mxu0
        %2171 = vmatprep.mubr.f32.mxu0 0.0
        %2172 = vmatmul.mubr.f32.gmra.mrb[0].mxu0 %v2038
        %v2173 = vpop.f32.mrb[0].mxu0
        %v2174 = vadd.f32 0.0, %v2173
        %v2175 = vpop.f32.mrb[0].mxu0
        %2176 = vmatprep.mubr.f32.mxu0 0.0
        %2177 = vmatmul.mubr.f32.gmra.mrb[0].mxu0 %v2041
        %v2178 = vpop.f32.mrb[0].mxu0
        %v2179 = vadd.f32 0.0, %v2178
        %v2180 = vpop.f32.mrb[0].mxu0
        %2181 = vmatprep.mubr.f32.mxu0 0.0
        %2182 = vmatmul.mubr.f32.gmra.mrb[0].mxu0 %v2044
        %v2183 = vpop.f32.mrb[0].mxu0
        %v2184 = vadd.f32 0.0, %v2183
        %v2185 = vpop.f32.mrb[0].mxu0
        %2186 = vmatprep.mubr.f32.mxu0 0.0
        %2187 = vmatmul.mubr.f32.gmra.mrb[0].mxu0 %v2047
        %v2188 = vpop.f32.mrb[0].mxu0
        %v2189 = vadd.f32 0.0, %v2188
        %v2190 = vpop.f32.mrb[0].mxu0
        %2191 = vmatprep.mubr.f32.mxu0 0.0
        %2192 = vmatmul.mubr.f32.gmra.mrb[0].mxu0 %v2050
        %v2193 = vpop.f32.mrb[0].mxu0
        %v2194 = vadd.f32 0.0, %v2193
        %v2195 = vpop.f32.mrb[0].mxu0
        %2196 = vdwg.mxu0
        %v2197 = vrot.slane %v1971, 4
        %v2198 = vadd.f32 %v1971, %v2197
        %v2199 = vrot.slane %v2198, 2
        %v2200 = vadd.f32 %v2198, %v2199
        %v2201 = vrot.slane %v2200, 1
        %v2202 = vadd.f32 %v2200, %v2201
        %v2203 = vmul.f32 %v794, %v2119
        %v2204 = vmul.f32 %v794, %v2124
        %v2205 = vmul.f32 %v794, %v2129
        %v2206 = vmul.f32 %v794, %v2134
        %v2207 = vmul.f32 %v794, %v2139
        %v2208 = vmul.f32 %v794, %v2144
        %v2209 = vmul.f32 %v794, %v2149
        %v2210 = vmul.f32 %v794, %v2154
        %v2211 = vmul.f32 %v794, %v2159
        %v2212 = vmul.f32 %v794, %v2164
        %v2213 = vmul.f32 %v794, %v2169
        %v2214 = vmul.f32 %v794, %v2174
        %v2215 = vmul.f32 %v794, %v2179
        %v2216 = vmul.f32 %v794, %v2184
        %v2217 = vmul.f32 %v794, %v2189
        %v2218 = vmul.f32 %v794, %v2194
        %v2219 = vsub.f32 %v1867, %v2203
        %v2220 = vsub.f32 %v1868, %v2204
        %v2221 = vsub.f32 %v1869, %v2205
        %v2222 = vsub.f32 %v1870, %v2206
        %v2223 = vsub.f32 %v1871, %v2207
        %v2224 = vsub.f32 %v1872, %v2208
        %v2225 = vsub.f32 %v1873, %v2209
        %v2226 = vsub.f32 %v1874, %v2210
        %v2227 = vsub.f32 %v1875, %v2211
        %v2228 = vsub.f32 %v1876, %v2212
        %v2229 = vsub.f32 %v1877, %v2213
        %v2230 = vsub.f32 %v1878, %v2214
        %v2231 = vsub.f32 %v1879, %v2215
        %v2232 = vsub.f32 %v1880, %v2216
        %v2233 = vsub.f32 %v1881, %v2217
        %v2234 = vsub.f32 %v1882, %v2218
        %v2235 = vmul.f32 %v794, %v2202
        %v2236 = vsub.f32 %v1884, %v2235
        %v2237 = vld [vmem:[%s389] sm:$0xff]
        %v2238 = vld [vmem:[%s398] sm:$0xff]
        %v2240 = vlaneseq
        %v2241 = vshrl.u32 %v2240, 7
        %v2242 = vsub.s32 0, %v2241
        %v2243 = vrot.slane %v2236, %v2242
        %2245 = vmatprep.subr.mxu0 0.0
        %2246 = vmatpush1.xpose.msra.mxu0 %v2219
        %2247 = vmatprep.subr.mxu0 0.0
        %2248 = vmatpush1.xpose.msra.mxu0 %v2220
        %2249 = vmatprep.subr.mxu0 0.0
        %2250 = vmatpush1.xpose.msra.mxu0 %v2221
        %2251 = vmatprep.subr.mxu0 0.0
        %2252 = vmatpush1.xpose.msra.mxu0 %v2222
        %2253 = vmatprep.subr.mxu0 0.0
        %2254 = vmatpush1.xpose.msra.mxu0 %v2223
        %2255 = vmatprep.subr.mxu0 0.0
        %2256 = vmatpush1.xpose.msra.mxu0 %v2224
        %2257 = vmatprep.subr.mxu0 0.0
        %2258 = vmatpush1.xpose.msra.mxu0 %v2225
        %2259 = vmatprep.subr.mxu0 0.0
        %2260 = vmatpush1.xpose.msra.mxu0 %v2226
        %2261 = vmatprep.subr.mxu0 0.0
        %2262 = vmatpush1.xpose.msra.mxu0 %v2227
        %2263 = vmatprep.subr.mxu0 0.0
        %2264 = vmatpush1.xpose.msra.mxu0 %v2228
        %2265 = vmatprep.subr.mxu0 0.0
        %2266 = vmatpush1.xpose.msra.mxu0 %v2229
        %2267 = vmatprep.subr.mxu0 0.0
        %2268 = vmatpush1.xpose.msra.mxu0 %v2230
        %2269 = vmatprep.subr.mxu0 0.0
        %2270 = vmatpush1.xpose.msra.mxu0 %v2231
        %2271 = vmatprep.subr.mxu0 0.0
        %2272 = vmatpush1.xpose.msra.mxu0 %v2232
        %2273 = vmatprep.subr.mxu0 0.0
        %2274 = vmatpush1.xpose.msra.mxu0 %v2233
        %2275 = vmatprep.subr.mxu0 0.0
        %2276 = vmatpush1.xpose.msra.mxu0 %v2234
        %2277 = vmatprep.subr.mxu0 0.0
        %2278 = vmatpush1.xpose.msra.mxu0 0.0
        %2279 = vmatprep.subr.mxu0 0.0
        %2280 = vmatpush1.xpose.msra.mxu0 0.0
        %2281 = vmatprep.subr.mxu0 0.0
        %2282 = vmatpush1.xpose.msra.mxu0 0.0
        %2283 = vmatprep.subr.mxu0 0.0
        %2284 = vmatpush1.xpose.msra.mxu0 0.0
        %2285 = vmatprep.subr.mxu0 0.0
        %2286 = vmatpush1.xpose.msra.mxu0 0.0
        %2287 = vmatprep.subr.mxu0 0.0
        %2288 = vmatpush1.xpose.msra.mxu0 0.0
        %2289 = vmatprep.subr.mxu0 0.0
        %2290 = vmatpush1.xpose.msra.mxu0 0.0
        %2291 = vmatprep.subr.mxu0 0.0
        %2292 = vmatpush1.xpose.msra.mxu0 0.0
        %2293 = vmatprep.subr.mxu0 0.0
        %2294 = vmatpush1.xpose.msra.mxu0 0.0
        %2295 = vmatprep.subr.mxu0 0.0
        %2296 = vmatpush1.xpose.msra.mxu0 0.0
        %2297 = vmatprep.subr.mxu0 0.0
        %2298 = vmatpush1.xpose.msra.mxu0 0.0
        %2299 = vmatprep.subr.mxu0 0.0
        %2300 = vmatpush1.xpose.msra.mxu0 0.0
        %2301 = vmatprep.subr.mxu0 0.0
        %2302 = vmatpush1.xpose.msra.mxu0 0.0
        %2303 = vmatprep.subr.mxu0 0.0
        %2304 = vmatpush1.xpose.msra.mxu0 0.0
        %2305 = vmatprep.subr.mxu0 0.0
        %2306 = vmatpush1.xpose.msra.mxu0 0.0
        %2307 = vmatprep.subr.mxu0 0.0
        %2308 = vmatpush1.xpose.msra.mxu0 0.0
        %2309 = vmatprep.mubr.f32.mxu0 0.0
        %2310 = vmatmul.mubr.f32.gmra.mrb[0].mxu0 %v2237
        %v2311 = vpop.f32.mrb[0].mxu0
        %v2312 = vadd.f32 %v2243, %v2311
        %v2313 = vpop.f32.mrb[0].mxu0
        %2314 = vdwg.mxu0
        %2315 = vmax.xlane.f32.xlu0 %v2312
        %v2316 = vpop.xlane.xlu0 %2315
        %v2317 = vsub.f32 %v2312, %v2316
        %v2318 = vmul.f32 %v2317, 1.442695
        %v2319 = vpow.pop %v2318
        %2320 = vadd.xlane.f32.xlu0 %v2319
        %v2321 = vpop.xlane.xlu0 %2320
        %v2322 = vrcp.pop %v2321
        %v2323 = vmul.f32 %v2319, %v2322
        %v2324 = vlog2.pop %v2321
        %v2325 = vmul.f32 %v2324, 0.6931472
        %v2326 = vadd.f32 %v2316, %v2325
        %v2327 = vsub.f32 %v2312, %v2326
        %v2328 = vsub.f32 0.0, %v2238
        %v2329 = vmul.f32 %v2328, %v2327
        %2330 = vadd.xlane.f32.xlu0 %v2329
        %v2331 = vpop.xlane.xlu0 %2330
        %v2332 = vrot.slane %v2331, 4
        %v2333 = vadd.f32 %v2331, %v2332
        %v2334 = vrot.slane %v2333, 2
        %v2335 = vadd.f32 %v2333, %v2334
        %v2336 = vrot.slane %v2335, 1
        %v2337 = vadd.f32 %v2335, %v2336
        %s2338 = vtos %v2337
        %v2339 = vstv %s2338
        %v2340 = vmul.f32 %v2339, 0.125
        %v2341 = vsub.f32 %v2323, %v2238
        %v2342 = vmul.f32 %v2341, 0.125
        %2343 = vxpose.xlu0.b32.start [1/16] %v2342, 128
        %2344 = vxpose.xlu0.b32.cont [2/16] 0.0, 128
        %2345 = vxpose.xlu0.b32.cont [3/16] 0.0, 128
        %2346 = vxpose.xlu0.b32.cont [4/16] 0.0, 128
        %2347 = vxpose.xlu0.b32.cont [5/16] 0.0, 128
        %2348 = vxpose.xlu0.b32.cont [6/16] 0.0, 128
        %2349 = vxpose.xlu0.b32.cont [7/16] 0.0, 128
        %2350 = vxpose.xlu0.b32.cont [8/16] 0.0, 128
        %2351 = vxpose.xlu0.b32.cont [9/16] 0.0, 128
        %2352 = vxpose.xlu0.b32.cont [10/16] 0.0, 128
        %2353 = vxpose.xlu0.b32.cont [11/16] 0.0, 128
        %2354 = vxpose.xlu0.b32.cont [12/16] 0.0, 128
        %2355 = vxpose.xlu0.b32.cont [13/16] 0.0, 128
        %2356 = vxpose.xlu0.b32.cont [14/16] 0.0, 128
        %2357 = vxpose.xlu0.b32.cont [15/16] 0.0, 128
        %2358 = vxpose.xlu0.b32.end [16/16] 0.0, 128
        %v2359 = vpop.trf.xlu0
        %v2360 = vpop.trf.xlu0
        %v2361 = vpop.trf.xlu0
        %v2362 = vpop.trf.xlu0
        %v2363 = vpop.trf.xlu0
        %v2364 = vpop.trf.xlu0
        %v2365 = vpop.trf.xlu0
        %v2366 = vpop.trf.xlu0
        %v2367 = vpop.trf.xlu0
        %v2368 = vpop.trf.xlu0
        %v2369 = vpop.trf.xlu0
        %v2370 = vpop.trf.xlu0
        %v2371 = vpop.trf.xlu0
        %v2372 = vpop.trf.xlu0
        %v2373 = vpop.trf.xlu0
        %v2374 = vpop.trf.xlu0
        %v2376 = vsel %vm594, %v2359, 0
        %v2379 = vsel %vm594, %v2360, 0
        %v2382 = vsel %vm594, %v2361, 0
        %v2385 = vsel %vm594, %v2362, 0
        %v2388 = vsel %vm594, %v2363, 0
        %v2391 = vsel %vm594, %v2364, 0
        %v2394 = vsel %vm594, %v2365, 0
        %v2397 = vsel %vm594, %v2366, 0
        %v2400 = vsel %vm594, %v2367, 0
        %v2403 = vsel %vm594, %v2368, 0
        %v2406 = vsel %vm594, %v2369, 0
        %v2409 = vsel %vm594, %v2370, 0
        %v2412 = vsel %vm594, %v2371, 0
        %v2415 = vsel %vm594, %v2372, 0
        %v2418 = vsel %vm594, %v2373, 0
        %v2421 = vsel %vm594, %v2374, 0
        %2423 = vmatprep.subr.mxu0 0.0
        %2424 = vmatpush1.msra.mxu0 %v2237
        %2425 = vmatprep.subr.mxu0 0.0
        %2426 = vmatpush1.msra.mxu0 0.0
        %2427 = vmatprep.subr.mxu0 0.0
        %2428 = vmatpush1.msra.mxu0 0.0
        %2429 = vmatprep.subr.mxu0 0.0
        %2430 = vmatpush1.msra.mxu0 0.0
        %2431 = vmatprep.subr.mxu0 0.0
        %2432 = vmatpush1.msra.mxu0 0.0
        %2433 = vmatprep.subr.mxu0 0.0
        %2434 = vmatpush1.msra.mxu0 0.0
        %2435 = vmatprep.subr.mxu0 0.0
        %2436 = vmatpush1.msra.mxu0 0.0
        %2437 = vmatprep.subr.mxu0 0.0
        %2438 = vmatpush1.msra.mxu0 0.0
        %2439 = vmatprep.subr.mxu0 0.0
        %2440 = vmatpush1.msra.mxu0 0.0
        %2441 = vmatprep.subr.mxu0 0.0
        %2442 = vmatpush1.msra.mxu0 0.0
        %2443 = vmatprep.subr.mxu0 0.0
        %2444 = vmatpush1.msra.mxu0 0.0
        %2445 = vmatprep.subr.mxu0 0.0
        %2446 = vmatpush1.msra.mxu0 0.0
        %2447 = vmatprep.subr.mxu0 0.0
        %2448 = vmatpush1.msra.mxu0 0.0
        %2449 = vmatprep.subr.mxu0 0.0
        %2450 = vmatpush1.msra.mxu0 0.0
        %2451 = vmatprep.subr.mxu0 0.0
        %2452 = vmatpush1.msra.mxu0 0.0
        %2453 = vmatprep.subr.mxu0 0.0
        %2454 = vmatpush1.msra.mxu0 0.0
        %2455 = vmatprep.subr.mxu0 0.0
        %2456 = vmatpush1.msra.mxu0 0.0
        %2457 = vmatprep.subr.mxu0 0.0
        %2458 = vmatpush1.msra.mxu0 0.0
        %2459 = vmatprep.subr.mxu0 0.0
        %2460 = vmatpush1.msra.mxu0 0.0
        %2461 = vmatprep.subr.mxu0 0.0
        %2462 = vmatpush1.msra.mxu0 0.0
        %2463 = vmatprep.subr.mxu0 0.0
        %2464 = vmatpush1.msra.mxu0 0.0
        %2465 = vmatprep.subr.mxu0 0.0
        %2466 = vmatpush1.msra.mxu0 0.0
        %2467 = vmatprep.subr.mxu0 0.0
        %2468 = vmatpush1.msra.mxu0 0.0
        %2469 = vmatprep.subr.mxu0 0.0
        %2470 = vmatpush1.msra.mxu0 0.0
        %2471 = vmatprep.subr.mxu0 0.0
        %2472 = vmatpush1.msra.mxu0 0.0
        %2473 = vmatprep.subr.mxu0 0.0
        %2474 = vmatpush1.msra.mxu0 0.0
        %2475 = vmatprep.subr.mxu0 0.0
        %2476 = vmatpush1.msra.mxu0 0.0
        %2477 = vmatprep.subr.mxu0 0.0
        %2478 = vmatpush1.msra.mxu0 0.0
        %2479 = vmatprep.subr.mxu0 0.0
        %2480 = vmatpush1.msra.mxu0 0.0
        %2481 = vmatprep.subr.mxu0 0.0
        %2482 = vmatpush1.msra.mxu0 0.0
        %2483 = vmatprep.subr.mxu0 0.0
        %2484 = vmatpush1.msra.mxu0 0.0
        %2485 = vmatprep.subr.mxu0 0.0
        %2486 = vmatpush1.msra.mxu0 0.0
        %2487 = vmatprep.mubr.f32.mxu0 0.0
        %2488 = vmatmul.mubr.f32.gmra.mrb[0].mxu0 %v2376
        %v2489 = vpop.f32.mrb[0].mxu0
        %v2490 = vadd.f32 0.0, %v2489
        %v2491 = vpop.f32.mrb[0].mxu0
        %2492 = vmatprep.mubr.f32.mxu0 0.0
        %2493 = vmatmul.mubr.f32.gmra.mrb[0].mxu0 %v2379
        %v2494 = vpop.f32.mrb[0].mxu0
        %v2495 = vadd.f32 0.0, %v2494
        %v2496 = vpop.f32.mrb[0].mxu0
        %2497 = vmatprep.mubr.f32.mxu0 0.0
        %2498 = vmatmul.mubr.f32.gmra.mrb[0].mxu0 %v2382
        %v2499 = vpop.f32.mrb[0].mxu0
        %v2500 = vadd.f32 0.0, %v2499
        %v2501 = vpop.f32.mrb[0].mxu0
        %2502 = vmatprep.mubr.f32.mxu0 0.0
        %2503 = vmatmul.mubr.f32.gmra.mrb[0].mxu0 %v2385
        %v2504 = vpop.f32.mrb[0].mxu0
        %v2505 = vadd.f32 0.0, %v2504
        %v2506 = vpop.f32.mrb[0].mxu0
        %2507 = vmatprep.mubr.f32.mxu0 0.0
        %2508 = vmatmul.mubr.f32.gmra.mrb[0].mxu0 %v2388
        %v2509 = vpop.f32.mrb[0].mxu0
        %v2510 = vadd.f32 0.0, %v2509
        %v2511 = vpop.f32.mrb[0].mxu0
        %2512 = vmatprep.mubr.f32.mxu0 0.0
        %2513 = vmatmul.mubr.f32.gmra.mrb[0].mxu0 %v2391
        %v2514 = vpop.f32.mrb[0].mxu0
        %v2515 = vadd.f32 0.0, %v2514
        %v2516 = vpop.f32.mrb[0].mxu0
        %2517 = vmatprep.mubr.f32.mxu0 0.0
        %2518 = vmatmul.mubr.f32.gmra.mrb[0].mxu0 %v2394
        %v2519 = vpop.f32.mrb[0].mxu0
        %v2520 = vadd.f32 0.0, %v2519
        %v2521 = vpop.f32.mrb[0].mxu0
        %2522 = vmatprep.mubr.f32.mxu0 0.0
        %2523 = vmatmul.mubr.f32.gmra.mrb[0].mxu0 %v2397
        %v2524 = vpop.f32.mrb[0].mxu0
        %v2525 = vadd.f32 0.0, %v2524
        %v2526 = vpop.f32.mrb[0].mxu0
        %2527 = vmatprep.mubr.f32.mxu0 0.0
        %2528 = vmatmul.mubr.f32.gmra.mrb[0].mxu0 %v2400
        %v2529 = vpop.f32.mrb[0].mxu0
        %v2530 = vadd.f32 0.0, %v2529
        %v2531 = vpop.f32.mrb[0].mxu0
        %2532 = vmatprep.mubr.f32.mxu0 0.0
        %2533 = vmatmul.mubr.f32.gmra.mrb[0].mxu0 %v2403
        %v2534 = vpop.f32.mrb[0].mxu0
        %v2535 = vadd.f32 0.0, %v2534
        %v2536 = vpop.f32.mrb[0].mxu0
        %2537 = vmatprep.mubr.f32.mxu0 0.0
        %2538 = vmatmul.mubr.f32.gmra.mrb[0].mxu0 %v2406
        %v2539 = vpop.f32.mrb[0].mxu0
        %v2540 = vadd.f32 0.0, %v2539
        %v2541 = vpop.f32.mrb[0].mxu0
        %2542 = vmatprep.mubr.f32.mxu0 0.0
        %2543 = vmatmul.mubr.f32.gmra.mrb[0].mxu0 %v2409
        %v2544 = vpop.f32.mrb[0].mxu0
        %v2545 = vadd.f32 0.0, %v2544
        %v2546 = vpop.f32.mrb[0].mxu0
        %2547 = vmatprep.mubr.f32.mxu0 0.0
        %2548 = vmatmul.mubr.f32.gmra.mrb[0].mxu0 %v2412
        %v2549 = vpop.f32.mrb[0].mxu0
        %v2550 = vadd.f32 0.0, %v2549
        %v2551 = vpop.f32.mrb[0].mxu0
        %2552 = vmatprep.mubr.f32.mxu0 0.0
        %2553 = vmatmul.mubr.f32.gmra.mrb[0].mxu0 %v2415
        %v2554 = vpop.f32.mrb[0].mxu0
        %v2555 = vadd.f32 0.0, %v2554
        %v2556 = vpop.f32.mrb[0].mxu0
        %2557 = vmatprep.mubr.f32.mxu0 0.0
        %2558 = vmatmul.mubr.f32.gmra.mrb[0].mxu0 %v2418
        %v2559 = vpop.f32.mrb[0].mxu0
        %v2560 = vadd.f32 0.0, %v2559
        %v2561 = vpop.f32.mrb[0].mxu0
        %2562 = vmatprep.mubr.f32.mxu0 0.0
        %2563 = vmatmul.mubr.f32.gmra.mrb[0].mxu0 %v2421
        %v2564 = vpop.f32.mrb[0].mxu0
        %v2565 = vadd.f32 0.0, %v2564
        %v2566 = vpop.f32.mrb[0].mxu0
        %2567 = vdwg.mxu0
        %2568 = vst [vmem:[%s447] sm:$0xff] %v2490
        %2569 = vst [vmem:[%s447 + $0x8] sm:$0xff] %v2495
        %2570 = vst [vmem:[%s447 + $0x10] sm:$0xff] %v2500
        %2571 = vst [vmem:[%s447 + $0x18] sm:$0xff] %v2505
        %2572 = vst [vmem:[%s447 + $0x20] sm:$0xff] %v2510
        %2573 = vst [vmem:[%s447 + $0x28] sm:$0xff] %v2515
        %2574 = vst [vmem:[%s447 + $0x30] sm:$0xff] %v2520
        %2575 = vst [vmem:[%s447 + $0x38] sm:$0xff] %v2525
        %2576 = vst [vmem:[%s447 + $0x40] sm:$0xff] %v2530
        %2577 = vst [vmem:[%s447 + $0x48] sm:$0xff] %v2535
        %2578 = vst [vmem:[%s447 + $0x50] sm:$0xff] %v2540
        %2579 = vst [vmem:[%s447 + $0x58] sm:$0xff] %v2545
        %2580 = vst [vmem:[%s447 + $0x60] sm:$0xff] %v2550
        %2581 = vst [vmem:[%s447 + $0x68] sm:$0xff] %v2555
        %2582 = vst [vmem:[%s447 + $0x70] sm:$0xff] %v2560
        %2583 = vst [vmem:[%s447 + $0x78] sm:$0xff] %v2565
        %v2584 = vrot.slane %v2342, 4
        %v2585 = vadd.f32 %v2342, %v2584
        %v2586 = vrot.slane %v2585, 2
        %v2587 = vadd.f32 %v2585, %v2586
        %v2588 = vrot.slane %v2587, 1
        %v2589 = vadd.f32 %v2587, %v2588
        %v2590 = vlaneseq
        %v2591 = vand.u32 %v2590, 127
        %vm2592 = vcmp.eq.f32.partialorder %v2312, %v2316
        %v2593 = vsel %vm2592, %v2591, 128
        %v2594 = vand.u32 %v2593, 65535
        %v2595 = vshra.s32 %v2593, 16
        %v2596 = vcvt.s32.f32 %v2594
        %v2597 = vcvt.s32.f32 %v2595
        %2598 = vmin.xlane.f32.xlu0 %v2597
        %v2599 = vpop.xlane.xlu0 %2598
        %vm2600 = vcmp.eq.f32.partialorder %v2597, %v2599
        %v2601 = vsel %vm2600, %v2596, inf
        %2602 = vmin.xlane.f32.xlu0 %v2601
        %v2603 = vpop.xlane.xlu0 %2602
        %v2604 = vcvt.f32.s32 %v2603
        %v2605 = vcvt.f32.s32 %v2599
        %v2606 = vshll.u32 %v2605, 16
        %v2607 = vadd.s32 %v2606, %v2604
        %vm2608 = vcmp.eq.s32.totalorder %v2591, %v2607
        %v2609 = vsel %vm2608, 1, 0
        %v2610 = vcvt.s32.f32 %v2609
        %v2611 = vmul.f32 %v2238, %v2610
        %2612 = vadd.xlane.f32.xlu0 %v2611
        %v2613 = vpop.xlane.xlu0 %2612
        %vm2614 = vcmask 7168
        %v2615 = vsel %vm2614, %v2613, 0.0
        %2616 = vadd.xlane.f32.xlu0 %v2615
        %v2617 = vpop.xlane.xlu0 %2616
        %v2618 = vrot.slane %v2617, 4
        %v2619 = vadd.f32 %v2617, %v2618
        %v2620 = vrot.slane %v2619, 2
        %v2621 = vadd.f32 %v2619, %v2620
        %v2622 = vrot.slane %v2621, 1
        %v2623 = vadd.f32 %v2621, %v2622
        %s2624 = vtos %v2623
        %v2625 = vstv %s2624
        %v2626 = vmul.f32 %v2625, 0.125
        %v2627 = vlaneseq
        %v2628 = vshrl.u32 %v2627, 7
        %vm2629 = vcmp.eq.s32.totalorder %v2591, 0
        %vm2630 = vcmp.eq.s32.totalorder %v2591, 1
        %v2631 = vsel %vm2630, %v2626, 0.0
        %v2632 = vsel %vm2629, %v2340, %v2631
        %vm2633 = vcmp.eq.s32.totalorder %v2628, 0
        %vm2634 = vcmp.eq.s32.totalorder %v2628, 1
        %v2635 = vsel %vm2634, %v2632, 0.0
        %v2636 = vsel %vm2633, %v2589, %v2635
        %2637 = vst [vmem:[%s454] sm:$0xff] %v2636
        %s2638 = sand.u32 %s211, 1
        %s2639 = scalar_lea.sflag [#allocation5], %s2638
        %s2640 = sand.u32 %s211, 1
        %s2641 = smul.addr %s2640, 128
        %s2642 = scalar_lea.vmem [#allocation12], %s2641
        %s2643 = sand.u32 %s237, 1
        %s2644 = scalar_lea.sflag [#allocation14], %s2643
        %s2645 = sand.u32 %s237, 1
        %s2646 = smul.addr %s2645, 8
        %s2647 = scalar_lea.vmem [#allocation13], %s2646
        // Predicated region
        $region69: #{tpu_custom_call.1} parent=47 // pred_check
          %p2648 = pneg %p221
        $region70: #{tpu_custom_call.1} parent=47 // pred_check_branch
          %2650 = sbr.rel (%p2648) target = $region72
        $region71: #{tpu_custom_call.1} parent=47 // pred_region
          %s2652 = ssub.s32 2048, 2048
          %2653 = vsyncadd %s2639, %s2652
          %s2654 = smul.addr %s36, 16
          %s2655 = smul.addr %s2654, 128
          %s2656 = scalar_lea.hbm %s7, %s2655
          %s2657 = sshll.u32 %s2642, 4
          %s2658 = int_to_ptr.vmem [resolvable:$true] %s2657
          %2663 = dma.vmem_to_hbm [thread:$0]  %s2658, 2048, %s2656, %s2639, 128, 128, 8
        $region72: #{tpu_custom_call.1} parent=47 // pred_fallthru
          _
        // Predicated region
        $region73: #{tpu_custom_call.1} parent=47 // pred_check
          %p2664 = pneg %p247
        $region74: #{tpu_custom_call.1} parent=47 // pred_check_branch
          %2666 = sbr.rel (%p2664) target = $region76
        $region75: #{tpu_custom_call.1} parent=47 // pred_region
          %s2668 = ssub.s32 128, 128
          %2669 = vsyncadd %s2644, %s2668
          %s2670 = smul.addr %s36, 128
          %s2671 = scalar_lea.hbm %s8, %s2670
          %s2673 = sshll.u32 %s2647, 4
          %s2674 = int_to_ptr.vmem [resolvable:$true] %s2673
          %2676 = dma.vmem_to_hbm [thread:$0]  %s2674, 128, %s2671, %s2644
        $region76: #{tpu_custom_call.1} parent=47 // pred_fallthru
          _
      $region48: #{tpu_custom_call.1} parent=5 // pred_fallthru
        _
      %p2677 = scmp.le.s32.totalorder 2, %s31
      // Predicated region
      $region77: #{tpu_custom_call.1} parent=5 // pred_check
        %p2678 = pneg %p2677
      $region78: #{tpu_custom_call.1} parent=5 // pred_check_branch
        %2680 = sbr.rel (%p2678) target = $region80
      $region79: #{tpu_custom_call.1} parent=5 // pred_region
        %s2681 = ssub.s32 %s31, 2
        // Predicated region
        $region81: #{tpu_custom_call.1} parent=79 // pred_check
          %p2682 = pneg %p227
        $region82: #{tpu_custom_call.1} parent=79 // pred_check_branch
          %2684 = sbr.rel (%p2682) target = $region84
        $region83: #{tpu_custom_call.1} parent=79 // pred_region
          %s2685 = sand.u32 %s212, 1
          %s2686 = scalar_lea.sflag [#allocation5], %s2685
          %s2687 = sand.u32 %s212, 1
          %s2688 = smul.addr %s2687, 128
          %s2689 = scalar_lea.vmem [#allocation12], %s2688
          %2690 = dma.done %s2686, 2048
        $region84: #{tpu_custom_call.1} parent=79 // pred_fallthru
          _
        // Predicated region
        $region85: #{tpu_custom_call.1} parent=79 // pred_check
          %p2691 = pneg %p253
        $region86: #{tpu_custom_call.1} parent=79 // pred_check_branch
          %2693 = sbr.rel (%p2691) target = $region88
        $region87: #{tpu_custom_call.1} parent=79 // pred_region
          %s2694 = sand.u32 %s238, 1
          %s2695 = scalar_lea.sflag [#allocation14], %s2694
          %s2696 = sand.u32 %s238, 1
          %s2697 = smul.addr %s2696, 8
          %s2698 = scalar_lea.vmem [#allocation13], %s2697
          %2699 = dma.done %s2695, 128
        $region88: #{tpu_custom_call.1} parent=79 // pred_fallthru
          _
      $region80: #{tpu_custom_call.1} parent=5 // pred_fallthru
        _
    $region6: #{tpu_custom_call.1} parent=1 // loop_footer
      %s35 = sadd.s32 1, %s31
    $region7: #{tpu_custom_call.1} parent=1 // loop_footer_branch
      %30 = sbr.rel target = $region3
    $region8: #{tpu_custom_call.1} parent=1 // loop_exit
      _
    %2700 = vsyncpa [#allocation4], 1
    %s2701 = scalar_lea.sflag [#allocation4], 1
    %2702 = vsyncpa %s2701, 1
    %2703 = vsyncpa [#allocation7], 1
    %s2704 = scalar_lea.sflag [#allocation7], 1
    %2705 = vsyncpa %s2704, 1
    %2706 = vsyncpa [#allocation10], 1
    %s2707 = scalar_lea.sflag [#allocation10], 1
    %2708 = vsyncpa %s2707, 1
    %2709 = vsyncpa [#allocation5], 1
    %s2710 = scalar_lea.sflag [#allocation5], 1
    %2711 = vsyncpa %s2710, 1
    %2712 = vsyncpa [#allocation14], 1
    %s2713 = scalar_lea.sflag [#allocation14], 1
    %2714 = vsyncpa %s2713, 1

</llo_original>
